<compile_context>
chip_gen: v6e
topology: v6e:2x2x1
jax: 0.10.0
libtpu: 0.0.40
codegen_flags: <defaults>
</compile_context>

<pallas_src>
import jax
import jax.numpy as jnp
from jax import lax
from jax.experimental import pallas as pl
from jax.experimental.pallas import tpu as pltpu

# ---- problem configuration (small, consistent with the PyTorch module) ----
CLS_HIDDEN  = 32                        # cls_hidden_dim (H)
QUERY_DIM   = 8                         # query_dim (Dq)
NUM_HEADS   = CLS_HIDDEN // QUERY_DIM   # = 4 (module overrides the ctor arg)
NUM_AB      = 14                        # num_abnormalities (A)
NUM_CLASSES = 3
NUM_LAYERS  = 2
BATCH       = 2
LN_EPS      = 1e-5                      # torch.nn.LayerNorm default eps
AC          = NUM_AB * NUM_CLASSES      # 42  — flattened classifier lanes
FA          = NUM_HEADS * NUM_AB        # 56  — fused (head, query) score lanes

# ---- packed-parameter buffer layout (rows x 128 lanes, f32) ----------------
# All multi-row block starts are multiples of 8.
ROW_PROJ  = 0      # + 32*l : 32 rows; lanes [0:32)=Wv(all heads), [32:88)=Wk@Qblk
ROW_FFW   = 64     # + 32*l : 32 rows; lanes [0:32)=W1, [32:64)=W2
ROW_SBLK  = 128    # 56 rows; lanes [0:56)=block-sum matrix, [56:88)=diag mask
ROW_WC    = 192    # 32 rows; lanes [0:42)=block-arranged classifier weights
ROW_CMASK = 224    # 14 rows; lanes [0:42)=abnormality selection mask
ROW_VEC   = 240    # + 8*l  : 8 rows per layer:
                   #   r0: [bv | bk@Qblk] (88 lanes)
                   #   r1: b1, r2: b2, r3: g1, r4: be1, r5: g2, r6: be2
ROW_BC    = 256    # 1 row (8-row block); lanes [0:42)=flattened classifier bias
PACK_ROWS  = 264
PACK_LANES = 128


def _layernorm(x, gamma, beta):
    mu = jnp.mean(x, axis=-1, keepdims=True)
    var = jnp.mean((x - mu) ** 2, axis=-1, keepdims=True)
    return (x - mu) * jax.lax.rsqrt(var + LN_EPS) * gamma + beta


def mhcac_kernel(cls_ref, p_ref, out_ref):
    """Everything resident in VMEM; single invocation (no grid, no scratch)."""
    H, Dq, A, NH = CLS_HIDDEN, QUERY_DIM, NUM_AB, NUM_HEADS
    B = cls_ref.shape[0]
    # lhs-transposed contraction (over the key/sublane axis), as used by the
    # official Pallas flash-attention backward kernels.
    TN = (((0,), (0,)), ((), ()))

    cls_tok = cls_ref[...]                                        # (B, H)
    # expanded cls token, flattened to (B*A, H): rows b*A + a
    x = jnp.concatenate(
        [jnp.broadcast_to(cls_tok[b:b + 1, :], (A, H)) for b in range(B)],
        axis=0)                                                   # (B*A, H)

    # shared constants (packed once): per-head block-sum + diagonal masks
    sblk  = p_ref[ROW_SBLK:ROW_SBLK + FA, 0:FA]                   # (56, 56)
    dmask = p_ref[ROW_SBLK:ROW_SBLK + FA, FA:FA + H]              # (56, 32)

    for l in range(NUM_LAYERS):                                   # static unroll
        # ---- fused V-projection + all-head scores: ONE matmul ------------
        wcomb = p_ref[ROW_PROJ + 32 * l: ROW_PROJ + 32 * l + H, 0:H + FA]  # (32,88)
        vec   = p_ref[ROW_VEC + 8 * l: ROW_VEC + 8 * l + 8, :]             # (8,128)
        bcomb = vec[0:1, 0:H + FA]                                          # (1,88)
        proj = jnp.dot(x, wcomb, preferred_element_type=jnp.float32) + bcomb
        v = proj[:, 0:H]                                # (B*A, 32): V, head h at lanes [h*8,(h+1)*8)
        s = proj[:, H:H + FA]                           # (B*A, 56): scores, lane h*14+q = s_h[b,q,k]/scale

        # ---- ONE softmax pass over the query axis (dim=1 in the reference) --
        # Row max over all 56 lanes is constant per (b,k,h) group -> valid shift.
        m = jnp.max(s, axis=-1, keepdims=True)
        e = jnp.exp(s - m)
        denom = jnp.dot(e, sblk, preferred_element_type=jnp.float32)  # per-head-block sums
        w = e / denom                                   # exact division (no approx recip)
        # TODO(synk): attn_dropout is stochastic in train mode; identity here (eval).

        # ---- attention output: one transposed matmul per batch ------------
        attn_parts = []
        for b in range(B):
            w_b = w[b * A:(b + 1) * A, :]               # (A, 56)
            v_b = v[b * A:(b + 1) * A, :]               # (A, 32)
            # full_b[h*14+q, h'*8+d] = sum_k w_h[b,q,k] * V_h'[b,k,d]
            full_b = lax.dot_general(w_b, v_b, TN,
                                     preferred_element_type=jnp.float32)  # (56,32)
            mb = full_b * dmask                         # keep diagonal (h == h') blocks
            attn_parts.append(mb[0:A] + mb[A:2 * A] + mb[2 * A:3 * A] + mb[3 * A:4 * A])
        attn = jnp.concatenate(attn_parts, axis=0)      # (B*A, 32), kept in vregs

        # ---- residual + LayerNorm + feed-forward ---------------------------
        g1, be1 = vec[3:4, 0:H], vec[4:5, 0:H]
        g2, be2 = vec[5:6, 0:H], vec[6:7, 0:H]
        y = _layernorm(x + attn, g1, be1)               # norm1

        w1 = p_ref[ROW_FFW + 32 * l: ROW_FFW + 32 * l + H, 0:H]
        w2 = p_ref[ROW_FFW + 32 * l: ROW_FFW + 32 * l + H, H:2 * H]
        b1 = vec[1:2, 0:H]
        b2 = vec[2:3, 0:H]
        h1 = jnp.maximum(
            jnp.dot(y, w1, preferred_element_type=jnp.float32) + b1, 0.0)
        ff = jnp.dot(h1, w2, preferred_element_type=jnp.float32) + b2
        x = _layernorm(y + ff, g2, be2)                 # norm2

    # ---- per-abnormality classifiers: one lane-dense matmul + masked reduce --
    wc_big = p_ref[ROW_WC: ROW_WC + H, 0:AC]            # (32, 42)
    cmask  = p_ref[ROW_CMASK: ROW_CMASK + A, 0:AC]      # (14, 42)
    bc     = p_ref[ROW_BC: ROW_BC + 1, 0:AC]            # (1, 42)
    z = jnp.dot(x, wc_big, preferred_element_type=jnp.float32)   # (B*A, 42)
    logits = []
    for b in range(B):
        logits.append(jnp.sum(z[b * A:(b + 1) * A, :] * cmask,
                              axis=0, keepdims=True))             # (1, 42)
    out_ref[...] = (jnp.concatenate(logits, axis=0) + bc).astype(out_ref.dtype)


# --------------------------------------------------------------------------
# Parameter init (natural shapes, as in MHCAC.__init__) and packing.
# --------------------------------------------------------------------------
def init_params(key):
    H, Dq, A, C, L, NH = (CLS_HIDDEN, QUERY_DIM, NUM_AB, NUM_CLASSES,
                          NUM_LAYERS, NUM_HEADS)
    ks = jax.random.split(key, 16)

    def u(k, shape, fan_in):
        bnd = 1.0 / float(fan_in) ** 0.5
        return jax.random.uniform(k, shape, jnp.float32, -bnd, bnd)

    xav = (6.0 / (A + Dq)) ** 0.5
    cq = jax.random.uniform(ks[0], (A, Dq), jnp.float32, -xav, xav)
    wq = u(ks[1], (L, A, Dq, Dq), Dq)       # W_Q_list, stored (in, out)
    bq = u(ks[2], (L, A, Dq), Dq)
    wk = u(ks[3], (L, NH, H, Dq), H)        # W_K_list
    bk = u(ks[4], (L, NH, 1, Dq), H)
    wv = u(ks[5], (L, NH, H, Dq), H)        # W_V_list
    bv = u(ks[6], (L, NH, 1, Dq), H)
    w1 = u(ks[7], (L, H, H), H)             # feed_forward[0]  (NH*Dq == H)
    b1 = u(ks[8], (L, 1, H), H)
    w2 = u(ks[9], (L, H, H), H)             # feed_forward[3]
    b2 = u(ks[10], (L, 1, H), H)
    g1  = jnp.ones((L, 1, 1, H), jnp.float32)
    be1 = jnp.zeros((L, 1, 1, H), jnp.float32)
    g2  = jnp.ones((L, 1, 1, H), jnp.float32)
    be2 = jnp.zeros((L, 1, 1, H), jnp.float32)
    wc = u(ks[11], (A, H, C), H)            # per-abnormality classifiers
    bc = u(ks[12], (A, C), H)
    return (cq, wq, bq, wk, bk, wv, bv, w1, b1, w2, b2,
            g1, be1, g2, be2, wc, bc)


def pack_params(params):
    """Pack all parameters into one lane-dense (264, 128) f32 buffer.

    Hoists the (input-independent) Q projection, folds 1/sqrt(Dq) into it,
    builds a block-diagonal Q, and folds it into the K projection weights so
    the kernel gets all-head scores straight out of a single matmul.  Also
    packs the softmax block-sum matrix, the head-diagonal mask, and the
    block-arranged classifier weights/mask."""
    (cq, wq, bq, wk, bk, wv, bv, w1, b1, w2, b2,
     g1, be1, g2, be2, wc, bc) = params
    H, Dq, A, C, NH = CLS_HIDDEN, QUERY_DIM, NUM_AB, NUM_CLASSES, NUM_HEADS
    scale = jnp.sqrt(jnp.float32(Dq))

    P = jnp.zeros((PACK_ROWS, PACK_LANES), jnp.float32)

    # --- layer-independent constants ---------------------------------------
    head_of_score_lane = jnp.arange(FA) // A             # (56,)
    head_of_value_lane = jnp.arange(H) // Dq              # (32,)
    sblk = (head_of_score_lane[:, None] ==
            head_of_score_lane[None, :]).astype(jnp.float32)          # (56,56)
    dmask = (head_of_score_lane[:, None] ==
             head_of_value_lane[None, :]).astype(jnp.float32)         # (56,32)
    P = P.at[ROW_SBLK:ROW_SBLK + FA, 0:FA].set(sblk)
    P = P.at[ROW_SBLK:ROW_SBLK + FA, FA:FA + H].set(dmask)

    # --- classifier: WC_big[h, a*C+c] = wc[a,h,c]; selection mask; bias -----
    P = P.at[ROW_WC:ROW_WC + H, 0:AC].set(
        jnp.transpose(wc, (1, 0, 2)).reshape(H, AC))
    P = P.at[ROW_CMASK:ROW_CMASK + A, 0:AC].set(
        jnp.repeat(jnp.eye(A, dtype=jnp.float32), C, axis=1))
    P = P.at[ROW_BC, 0:AC].set(bc.reshape(AC))

    # --- per-layer weights ---------------------------------------------------
    for l in range(NUM_LAYERS):
        # head-arranged K / V weights: head h at lanes [h*Dq, (h+1)*Dq)
        wk_arr = jnp.transpose(wk[l], (1, 0, 2)).reshape(H, NH * Dq)  # (32,32)
        wv_arr = jnp.transpose(wv[l], (1, 0, 2)).reshape(H, NH * Dq)  # (32,32)
        bk_arr = bk[l].reshape(NH * Dq)
        bv_arr = bv[l].reshape(NH * Dq)
        # hoisted, pre-scaled query projection (same Q for every head)
        qs = (jnp.einsum('ad,adq->aq', cq, wq[l]) + bq[l]) / scale    # (A, Dq)
        # block-diagonal Q: Qblk[h*Dq+d, h*A+q] = qs[q, d]
        qblk = jnp.zeros((H, FA), jnp.float32)
        for h in range(NH):
            qblk = qblk.at[h * Dq:(h + 1) * Dq, h * A:(h + 1) * A].set(qs.T)
        wkq = wk_arr @ qblk                                            # (32,56)
        bkq = bk_arr @ qblk                                            # (56,)

        P = P.at[ROW_PROJ + 32 * l: ROW_PROJ + 32 * l + H, 0:H].set(wv_arr)
        P = P.at[ROW_PROJ + 32 * l: ROW_PROJ + 32 * l + H, H:H + FA].set(wkq)
        P = P.at[ROW_FFW + 32 * l: ROW_FFW + 32 * l + H, 0:H].set(w1[l])
        P = P.at[ROW_FFW + 32 * l: ROW_FFW + 32 * l + H, H:2 * H].set(w2[l])

        r = ROW_VEC + 8 * l
        P = P.at[r, 0:H].set(bv_arr)
        P = P.at[r, H:H + FA].set(bkq)
        P = P.at[r + 1, 0:H].set(b1[l].reshape(H))
        P = P.at[r + 2, 0:H].set(b2[l].reshape(H))
        P = P.at[r + 3, 0:H].set(g1[l].reshape(H))
        P = P.at[r + 4, 0:H].set(be1[l].reshape(H))
        P = P.at[r + 5, 0:H].set(g2[l].reshape(H))
        P = P.at[r + 6, 0:H].set(be2[l].reshape(H))
    return P


@jax.jit
def mhcac_forward(cls_token, packed_params):
    B = cls_token.shape[0]
    vmem = pl.BlockSpec(memory_space=pltpu.MemorySpace.VMEM)
    flat = pl.pallas_call(
        mhcac_kernel,
        out_shape=jax.ShapeDtypeStruct((B, AC), jnp.float32),   # lane-dense out
        in_specs=[vmem, vmem],
        out_specs=vmem,
        compiler_params=pltpu.CompilerParams(vmem_limit_bytes=4 * 1024 * 1024),
    )(cls_token, packed_params)
    return flat.reshape(B, NUM_AB, NUM_CLASSES)


# --------------------------------------------------------------------------
# Pure-JAX reference mirroring the PyTorch forward (eval mode, exact softmax).
# --------------------------------------------------------------------------
def mhcac_reference(cls_token, params):
    (cq, wq, bq, wk, bk, wv, bv, w1, b1, w2, b2,
     g1, be1, g2, be2, wc, bc) = params
    B = cls_token.shape[0]
    x = jnp.broadcast_to(cls_token[:, None, :], (B, NUM_AB, CLS_HIDDEN))
    scale = jnp.sqrt(jnp.float32(QUERY_DIM))
    for l in range(NUM_LAYERS):
        Q = jnp.einsum('ad,adq->aq', cq, wq[l]) + bq[l]
        heads = []
        for h in range(NUM_HEADS):
            K = jnp.einsum('bah,hd->bad', x, wk[l, h]) + bk[l, h]
            V = jnp.einsum('bah,hd->bad', x, wv[l, h]) + bv[l, h]
            s = jnp.einsum('qd,bkd->bqk', Q, K) / scale
            w = jax.nn.softmax(s, axis=1)       # dim=1 (query axis), as in torch
            heads.append(jnp.einsum('bqk,bkd->bqd', w, V))
        attn = jnp.concatenate(heads, axis=-1)
        y = _layernorm(x + attn, g1[l], be1[l])
        h1 = jax.nn.relu(jnp.einsum('bah,hk->bak', y, w1[l]) + b1[l])
        ff = jnp.einsum('bah,hk->bak', h1, w2[l]) + b2[l]
        x = _layernorm(y + ff, g2[l], be2[l])
    return jnp.einsum('bah,ahc->bac', x, wc) + bc[None]


if __name__ == "__main__":
    key = jax.random.PRNGKey(0)
    pkey, xkey = jax.random.split(key)
    params = init_params(pkey)
    packed = pack_params(params)          # one-time, input-independent packing
    cls_token = jax.random.normal(xkey, (BATCH, CLS_HIDDEN), jnp.float32)

    out = mhcac_forward(cls_token, packed)
    out = jax.block_until_ready(out)

    ref = mhcac_reference(cls_token, params)
    assert out.shape == (BATCH, NUM_AB, NUM_CLASSES), out.shape
    max_err = float(jnp.max(jnp.abs(out - ref)))
    assert jnp.allclose(out, ref, atol=2e-3, rtol=2e-3), ("max abs err:", max_err)
    print("KERNEL_OK")
</pallas_src>

<mosaic_0001>
module attributes {stable_mosaic.version = 11 : i64} {
  func.func @mhcac_kernel(%arg0: memref<2x32xf32, #tpu.memory_space<vmem>>, %arg1: memref<264x128xf32, #tpu.memory_space<vmem>>, %arg2: memref<2x42xf32, #tpu.memory_space<vmem>>) attributes {dimension_semantics = [], scalar_prefetch = 0 : i64, scratch_operands = 0 : i64, tpu.core_type = #tpu.core_type<tc>} {
    %c0 = arith.constant 0 : index
    %c0_0 = arith.constant 0 : index
    %0 = vector.load %arg0[%c0, %c0_0] : memref<2x32xf32, #tpu.memory_space<vmem>>, vector<2x32xf32>
    %1 = vector.extract_strided_slice %0 {offsets = [0, 0], sizes = [1, 32], strides = [1, 1]} : vector<2x32xf32> to vector<1x32xf32>
    %2 = vector.shape_cast %1 : vector<1x32xf32> to vector<1x32xf32>
    %3 = vector.broadcast %2 : vector<1x32xf32> to vector<14x32xf32>
    %4 = vector.extract_strided_slice %0 {offsets = [1, 0], sizes = [1, 32], strides = [1, 1]} : vector<2x32xf32> to vector<1x32xf32>
    %5 = vector.shape_cast %4 : vector<1x32xf32> to vector<1x32xf32>
    %6 = vector.broadcast %5 : vector<1x32xf32> to vector<14x32xf32>
    %7 = tpu.concatenate %3, %6 in 0 : vector<14x32xf32>, vector<14x32xf32> -> vector<28x32xf32>
    %c128 = arith.constant 128 : index
    %c0_1 = arith.constant 0 : index
    %8 = vector.load %arg1[%c128, %c0_1] : memref<264x128xf32, #tpu.memory_space<vmem>>, vector<56x56xf32>
    %c128_2 = arith.constant 128 : index
    %c56 = arith.constant 56 : index
    %9 = vector.load %arg1[%c128_2, %c56] : memref<264x128xf32, #tpu.memory_space<vmem>>, vector<56x32xf32>
    %c0_3 = arith.constant 0 : index
    %c0_4 = arith.constant 0 : index
    %10 = vector.load %arg1[%c0_3, %c0_4] : memref<264x128xf32, #tpu.memory_space<vmem>>, vector<32x88xf32>
    %c240 = arith.constant 240 : index
    %c0_5 = arith.constant 0 : index
    %11 = vector.load %arg1[%c240, %c0_5] : memref<264x128xf32, #tpu.memory_space<vmem>>, vector<8x128xf32>
    %12 = vector.extract_strided_slice %11 {offsets = [0, 0], sizes = [1, 88], strides = [1, 1]} : vector<8x128xf32> to vector<1x88xf32>
    %cst = arith.constant dense<0.000000e+00> : vector<28x88xf32>
    %13 = tpu.matmul %7, %10, %cst {dimension_numbers = #tpu.dot_dimension_numbers<[1], [0], [0], [1], [0, 0, 1, 1], [], []>} : vector<28x32xf32>, vector<32x88xf32>, vector<28x88xf32> -> vector<28x88xf32>
    %14 = vector.broadcast %12 : vector<1x88xf32> to vector<28x88xf32>
    %15 = arith.addf %13, %14 : vector<28x88xf32>
    %16 = vector.extract_strided_slice %15 {offsets = [0, 0], sizes = [28, 32], strides = [1, 1]} : vector<28x88xf32> to vector<28x32xf32>
    %17 = vector.extract_strided_slice %15 {offsets = [0, 32], sizes = [28, 56], strides = [1, 1]} : vector<28x88xf32> to vector<28x56xf32>
    %cst_6 = arith.constant dense<0xFF800000> : vector<28xf32>
    %18 = vector.multi_reduction <maximumf>, %17, %cst_6 [1] : vector<28x56xf32> to vector<28xf32>
    %19 = vector.shape_cast %18 : vector<28xf32> to vector<28x1xf32>
    %20 = vector.broadcast %19 : vector<28x1xf32> to vector<28x56xf32>
    %21 = arith.subf %17, %20 : vector<28x56xf32>
    %22 = math.exp %21 : vector<28x56xf32>
    %cst_7 = arith.constant dense<0.000000e+00> : vector<28x56xf32>
    %23 = tpu.matmul %22, %8, %cst_7 {dimension_numbers = #tpu.dot_dimension_numbers<[1], [0], [0], [1], [0, 0, 1, 1], [], []>} : vector<28x56xf32>, vector<56x56xf32>, vector<28x56xf32> -> vector<28x56xf32>
    %24 = arith.divf %22, %23 : vector<28x56xf32>
    %25 = vector.extract_strided_slice %24 {offsets = [0, 0], sizes = [14, 56], strides = [1, 1]} : vector<28x56xf32> to vector<14x56xf32>
    %26 = vector.extract_strided_slice %16 {offsets = [0, 0], sizes = [14, 32], strides = [1, 1]} : vector<28x32xf32> to vector<14x32xf32>
    %cst_8 = arith.constant dense<0.000000e+00> : vector<56x32xf32>
    %27 = tpu.matmul %25, %26, %cst_8 {dimension_numbers = #tpu.dot_dimension_numbers<[0], [0], [1], [1], [0, 1, 1, 1], [], []>} : vector<14x56xf32>, vector<14x32xf32>, vector<56x32xf32> -> vector<56x32xf32>
    %28 = arith.mulf %27, %9 : vector<56x32xf32>
    %29 = vector.extract_strided_slice %28 {offsets = [0, 0], sizes = [14, 32], strides = [1, 1]} : vector<56x32xf32> to vector<14x32xf32>
    %30 = vector.extract_strided_slice %28 {offsets = [14, 0], sizes = [14, 32], strides = [1, 1]} : vector<56x32xf32> to vector<14x32xf32>
    %31 = arith.addf %29, %30 : vector<14x32xf32>
    %32 = vector.extract_strided_slice %28 {offsets = [28, 0], sizes = [14, 32], strides = [1, 1]} : vector<56x32xf32> to vector<14x32xf32>
    %33 = arith.addf %31, %32 : vector<14x32xf32>
    %34 = vector.extract_strided_slice %28 {offsets = [42, 0], sizes = [14, 32], strides = [1, 1]} : vector<56x32xf32> to vector<14x32xf32>
    %35 = arith.addf %33, %34 : vector<14x32xf32>
    %36 = vector.extract_strided_slice %24 {offsets = [14, 0], sizes = [14, 56], strides = [1, 1]} : vector<28x56xf32> to vector<14x56xf32>
    %37 = vector.extract_strided_slice %16 {offsets = [14, 0], sizes = [14, 32], strides = [1, 1]} : vector<28x32xf32> to vector<14x32xf32>
    %cst_9 = arith.constant dense<0.000000e+00> : vector<56x32xf32>
    %38 = tpu.matmul %36, %37, %cst_9 {dimension_numbers = #tpu.dot_dimension_numbers<[0], [0], [1], [1], [0, 1, 1, 1], [], []>} : vector<14x56xf32>, vector<14x32xf32>, vector<56x32xf32> -> vector<56x32xf32>
    %39 = arith.mulf %38, %9 : vector<56x32xf32>
    %40 = vector.extract_strided_slice %39 {offsets = [0, 0], sizes = [14, 32], strides = [1, 1]} : vector<56x32xf32> to vector<14x32xf32>
    %41 = vector.extract_strided_slice %39 {offsets = [14, 0], sizes = [14, 32], strides = [1, 1]} : vector<56x32xf32> to vector<14x32xf32>
    %42 = arith.addf %40, %41 : vector<14x32xf32>
    %43 = vector.extract_strided_slice %39 {offsets = [28, 0], sizes = [14, 32], strides = [1, 1]} : vector<56x32xf32> to vector<14x32xf32>
    %44 = arith.addf %42, %43 : vector<14x32xf32>
    %45 = vector.extract_strided_slice %39 {offsets = [42, 0], sizes = [14, 32], strides = [1, 1]} : vector<56x32xf32> to vector<14x32xf32>
    %46 = arith.addf %44, %45 : vector<14x32xf32>
    %47 = tpu.concatenate %35, %46 in 0 : vector<14x32xf32>, vector<14x32xf32> -> vector<28x32xf32>
    %48 = vector.extract_strided_slice %11 {offsets = [3, 0], sizes = [1, 32], strides = [1, 1]} : vector<8x128xf32> to vector<1x32xf32>
    %49 = vector.extract_strided_slice %11 {offsets = [4, 0], sizes = [1, 32], strides = [1, 1]} : vector<8x128xf32> to vector<1x32xf32>
    %50 = vector.extract_strided_slice %11 {offsets = [5, 0], sizes = [1, 32], strides = [1, 1]} : vector<8x128xf32> to vector<1x32xf32>
    %51 = vector.extract_strided_slice %11 {offsets = [6, 0], sizes = [1, 32], strides = [1, 1]} : vector<8x128xf32> to vector<1x32xf32>
    %52 = arith.addf %7, %47 : vector<28x32xf32>
    %cst_10 = arith.constant dense<0.000000e+00> : vector<28xf32>
    %53 = vector.multi_reduction <add>, %52, %cst_10 [1] : vector<28x32xf32> to vector<28xf32>
    %54 = vector.shape_cast %53 : vector<28xf32> to vector<28x1xf32>
    %cst_11 = arith.constant 3.200000e+01 : f32
    %55 = vector.broadcast %cst_11 : f32 to vector<28x1xf32>
    %56 = arith.divf %54, %55 : vector<28x1xf32>
    %57 = vector.broadcast %56 : vector<28x1xf32> to vector<28x32xf32>
    %58 = arith.subf %52, %57 : vector<28x32xf32>
    %59 = arith.mulf %58, %58 : vector<28x32xf32>
    %cst_12 = arith.constant dense<0.000000e+00> : vector<28xf32>
    %60 = vector.multi_reduction <add>, %59, %cst_12 [1] : vector<28x32xf32> to vector<28xf32>
    %61 = vector.shape_cast %60 : vector<28xf32> to vector<28x1xf32>
    %cst_13 = arith.constant 3.200000e+01 : f32
    %62 = vector.broadcast %cst_13 : f32 to vector<28x1xf32>
    %63 = arith.divf %61, %62 : vector<28x1xf32>
    %64 = vector.broadcast %56 : vector<28x1xf32> to vector<28x32xf32>
    %65 = arith.subf %52, %64 : vector<28x32xf32>
    %cst_14 = arith.constant 9.99999974E-6 : f32
    %66 = vector.broadcast %cst_14 : f32 to vector<28x1xf32>
    %67 = arith.addf %63, %66 : vector<28x1xf32>
    %68 = math.rsqrt %67 : vector<28x1xf32>
    %69 = vector.broadcast %68 : vector<28x1xf32> to vector<28x32xf32>
    %70 = arith.mulf %65, %69 : vector<28x32xf32>
    %71 = vector.broadcast %48 : vector<1x32xf32> to vector<28x32xf32>
    %72 = arith.mulf %70, %71 : vector<28x32xf32>
    %73 = vector.broadcast %49 : vector<1x32xf32> to vector<28x32xf32>
    %74 = arith.addf %72, %73 : vector<28x32xf32>
    %c64 = arith.constant 64 : index
    %c0_15 = arith.constant 0 : index
    %75 = vector.load %arg1[%c64, %c0_15] : memref<264x128xf32, #tpu.memory_space<vmem>>, vector<32x32xf32>
    %c64_16 = arith.constant 64 : index
    %c32 = arith.constant 32 : index
    %76 = vector.load %arg1[%c64_16, %c32] : memref<264x128xf32, #tpu.memory_space<vmem>>, vector<32x32xf32>
    %77 = vector.extract_strided_slice %11 {offsets = [1, 0], sizes = [1, 32], strides = [1, 1]} : vector<8x128xf32> to vector<1x32xf32>
    %78 = vector.extract_strided_slice %11 {offsets = [2, 0], sizes = [1, 32], strides = [1, 1]} : vector<8x128xf32> to vector<1x32xf32>
    %cst_17 = arith.constant dense<0.000000e+00> : vector<28x32xf32>
    %79 = tpu.matmul %74, %75, %cst_17 {dimension_numbers = #tpu.dot_dimension_numbers<[1], [0], [0], [1], [0, 0, 1, 1], [], []>} : vector<28x32xf32>, vector<32x32xf32>, vector<28x32xf32> -> vector<28x32xf32>
    %80 = vector.broadcast %77 : vector<1x32xf32> to vector<28x32xf32>
    %81 = arith.addf %79, %80 : vector<28x32xf32>
    %cst_18 = arith.constant 0.000000e+00 : f32
    %82 = vector.broadcast %cst_18 : f32 to vector<28x32xf32>
    %83 = arith.maximumf %81, %82 : vector<28x32xf32>
    %cst_19 = arith.constant dense<0.000000e+00> : vector<28x32xf32>
    %84 = tpu.matmul %83, %76, %cst_19 {dimension_numbers = #tpu.dot_dimension_numbers<[1], [0], [0], [1], [0, 0, 1, 1], [], []>} : vector<28x32xf32>, vector<32x32xf32>, vector<28x32xf32> -> vector<28x32xf32>
    %85 = vector.broadcast %78 : vector<1x32xf32> to vector<28x32xf32>
    %86 = arith.addf %84, %85 : vector<28x32xf32>
    %87 = arith.addf %74, %86 : vector<28x32xf32>
    %cst_20 = arith.constant dense<0.000000e+00> : vector<28xf32>
    %88 = vector.multi_reduction <add>, %87, %cst_20 [1] : vector<28x32xf32> to vector<28xf32>
    %89 = vector.shape_cast %88 : vector<28xf32> to vector<28x1xf32>
    %cst_21 = arith.constant 3.200000e+01 : f32
    %90 = vector.broadcast %cst_21 : f32 to vector<28x1xf32>
    %91 = arith.divf %89, %90 : vector<28x1xf32>
    %92 = vector.broadcast %91 : vector<28x1xf32> to vector<28x32xf32>
    %93 = arith.subf %87, %92 : vector<28x32xf32>
    %94 = arith.mulf %93, %93 : vector<28x32xf32>
    %cst_22 = arith.constant dense<0.000000e+00> : vector<28xf32>
    %95 = vector.multi_reduction <add>, %94, %cst_22 [1] : vector<28x32xf32> to vector<28xf32>
    %96 = vector.shape_cast %95 : vector<28xf32> to vector<28x1xf32>
    %cst_23 = arith.constant 3.200000e+01 : f32
    %97 = vector.broadcast %cst_23 : f32 to vector<28x1xf32>
    %98 = arith.divf %96, %97 : vector<28x1xf32>
    %99 = vector.broadcast %91 : vector<28x1xf32> to vector<28x32xf32>
    %100 = arith.subf %87, %99 : vector<28x32xf32>
    %cst_24 = arith.constant 9.99999974E-6 : f32
    %101 = vector.broadcast %cst_24 : f32 to vector<28x1xf32>
    %102 = arith.addf %98, %101 : vector<28x1xf32>
    %103 = math.rsqrt %102 : vector<28x1xf32>
    %104 = vector.broadcast %103 : vector<28x1xf32> to vector<28x32xf32>
    %105 = arith.mulf %100, %104 : vector<28x32xf32>
    %106 = vector.broadcast %50 : vector<1x32xf32> to vector<28x32xf32>
    %107 = arith.mulf %105, %106 : vector<28x32xf32>
    %108 = vector.broadcast %51 : vector<1x32xf32> to vector<28x32xf32>
    %109 = arith.addf %107, %108 : vector<28x32xf32>
    %c32_25 = arith.constant 32 : index
    %c0_26 = arith.constant 0 : index
    %110 = vector.load %arg1[%c32_25, %c0_26] : memref<264x128xf32, #tpu.memory_space<vmem>>, vector<32x88xf32>
    %c248 = arith.constant 248 : index
    %c0_27 = arith.constant 0 : index
    %111 = vector.load %arg1[%c248, %c0_27] : memref<264x128xf32, #tpu.memory_space<vmem>>, vector<8x128xf32>
    %112 = vector.extract_strided_slice %111 {offsets = [0, 0], sizes = [1, 88], strides = [1, 1]} : vector<8x128xf32> to vector<1x88xf32>
    %cst_28 = arith.constant dense<0.000000e+00> : vector<28x88xf32>
    %113 = tpu.matmul %109, %110, %cst_28 {dimension_numbers = #tpu.dot_dimension_numbers<[1], [0], [0], [1], [0, 0, 1, 1], [], []>} : vector<28x32xf32>, vector<32x88xf32>, vector<28x88xf32> -> vector<28x88xf32>
    %114 = vector.broadcast %112 : vector<1x88xf32> to vector<28x88xf32>
    %115 = arith.addf %113, %114 : vector<28x88xf32>
    %116 = vector.extract_strided_slice %115 {offsets = [0, 0], sizes = [28, 32], strides = [1, 1]} : vector<28x88xf32> to vector<28x32xf32>
    %117 = vector.extract_strided_slice %115 {offsets = [0, 32], sizes = [28, 56], strides = [1, 1]} : vector<28x88xf32> to vector<28x56xf32>
    %cst_29 = arith.constant dense<0xFF800000> : vector<28xf32>
    %118 = vector.multi_reduction <maximumf>, %117, %cst_29 [1] : vector<28x56xf32> to vector<28xf32>
    %119 = vector.shape_cast %118 : vector<28xf32> to vector<28x1xf32>
    %120 = vector.broadcast %119 : vector<28x1xf32> to vector<28x56xf32>
    %121 = arith.subf %117, %120 : vector<28x56xf32>
    %122 = math.exp %121 : vector<28x56xf32>
    %cst_30 = arith.constant dense<0.000000e+00> : vector<28x56xf32>
    %123 = tpu.matmul %122, %8, %cst_30 {dimension_numbers = #tpu.dot_dimension_numbers<[1], [0], [0], [1], [0, 0, 1, 1], [], []>} : vector<28x56xf32>, vector<56x56xf32>, vector<28x56xf32> -> vector<28x56xf32>
    %124 = arith.divf %122, %123 : vector<28x56xf32>
    %125 = vector.extract_strided_slice %124 {offsets = [0, 0], sizes = [14, 56], strides = [1, 1]} : vector<28x56xf32> to vector<14x56xf32>
    %126 = vector.extract_strided_slice %116 {offsets = [0, 0], sizes = [14, 32], strides = [1, 1]} : vector<28x32xf32> to vector<14x32xf32>
    %cst_31 = arith.constant dense<0.000000e+00> : vector<56x32xf32>
    %127 = tpu.matmul %125, %126, %cst_31 {dimension_numbers = #tpu.dot_dimension_numbers<[0], [0], [1], [1], [0, 1, 1, 1], [], []>} : vector<14x56xf32>, vector<14x32xf32>, vector<56x32xf32> -> vector<56x32xf32>
    %128 = arith.mulf %127, %9 : vector<56x32xf32>
    %129 = vector.extract_strided_slice %128 {offsets = [0, 0], sizes = [14, 32], strides = [1, 1]} : vector<56x32xf32> to vector<14x32xf32>
    %130 = vector.extract_strided_slice %128 {offsets = [14, 0], sizes = [14, 32], strides = [1, 1]} : vector<56x32xf32> to vector<14x32xf32>
    %131 = arith.addf %129, %130 : vector<14x32xf32>
    %132 = vector.extract_strided_slice %128 {offsets = [28, 0], sizes = [14, 32], strides = [1, 1]} : vector<56x32xf32> to vector<14x32xf32>
    %133 = arith.addf %131, %132 : vector<14x32xf32>
    %134 = vector.extract_strided_slice %128 {offsets = [42, 0], sizes = [14, 32], strides = [1, 1]} : vector<56x32xf32> to vector<14x32xf32>
    %135 = arith.addf %133, %134 : vector<14x32xf32>
    %136 = vector.extract_strided_slice %124 {offsets = [14, 0], sizes = [14, 56], strides = [1, 1]} : vector<28x56xf32> to vector<14x56xf32>
    %137 = vector.extract_strided_slice %116 {offsets = [14, 0], sizes = [14, 32], strides = [1, 1]} : vector<28x32xf32> to vector<14x32xf32>
    %cst_32 = arith.constant dense<0.000000e+00> : vector<56x32xf32>
    %138 = tpu.matmul %136, %137, %cst_32 {dimension_numbers = #tpu.dot_dimension_numbers<[0], [0], [1], [1], [0, 1, 1, 1], [], []>} : vector<14x56xf32>, vector<14x32xf32>, vector<56x32xf32> -> vector<56x32xf32>
    %139 = arith.mulf %138, %9 : vector<56x32xf32>
    %140 = vector.extract_strided_slice %139 {offsets = [0, 0], sizes = [14, 32], strides = [1, 1]} : vector<56x32xf32> to vector<14x32xf32>
    %141 = vector.extract_strided_slice %139 {offsets = [14, 0], sizes = [14, 32], strides = [1, 1]} : vector<56x32xf32> to vector<14x32xf32>
    %142 = arith.addf %140, %141 : vector<14x32xf32>
    %143 = vector.extract_strided_slice %139 {offsets = [28, 0], sizes = [14, 32], strides = [1, 1]} : vector<56x32xf32> to vector<14x32xf32>
    %144 = arith.addf %142, %143 : vector<14x32xf32>
    %145 = vector.extract_strided_slice %139 {offsets = [42, 0], sizes = [14, 32], strides = [1, 1]} : vector<56x32xf32> to vector<14x32xf32>
    %146 = arith.addf %144, %145 : vector<14x32xf32>
    %147 = tpu.concatenate %135, %146 in 0 : vector<14x32xf32>, vector<14x32xf32> -> vector<28x32xf32>
    %148 = vector.extract_strided_slice %111 {offsets = [3, 0], sizes = [1, 32], strides = [1, 1]} : vector<8x128xf32> to vector<1x32xf32>
    %149 = vector.extract_strided_slice %111 {offsets = [4, 0], sizes = [1, 32], strides = [1, 1]} : vector<8x128xf32> to vector<1x32xf32>
    %150 = vector.extract_strided_slice %111 {offsets = [5, 0], sizes = [1, 32], strides = [1, 1]} : vector<8x128xf32> to vector<1x32xf32>
    %151 = vector.extract_strided_slice %111 {offsets = [6, 0], sizes = [1, 32], strides = [1, 1]} : vector<8x128xf32> to vector<1x32xf32>
    %152 = arith.addf %109, %147 : vector<28x32xf32>
    %cst_33 = arith.constant dense<0.000000e+00> : vector<28xf32>
    %153 = vector.multi_reduction <add>, %152, %cst_33 [1] : vector<28x32xf32> to vector<28xf32>
    %154 = vector.shape_cast %153 : vector<28xf32> to vector<28x1xf32>
    %cst_34 = arith.constant 3.200000e+01 : f32
    %155 = vector.broadcast %cst_34 : f32 to vector<28x1xf32>
    %156 = arith.divf %154, %155 : vector<28x1xf32>
    %157 = vector.broadcast %156 : vector<28x1xf32> to vector<28x32xf32>
    %158 = arith.subf %152, %157 : vector<28x32xf32>
    %159 = arith.mulf %158, %158 : vector<28x32xf32>
    %cst_35 = arith.constant dense<0.000000e+00> : vector<28xf32>
    %160 = vector.multi_reduction <add>, %159, %cst_35 [1] : vector<28x32xf32> to vector<28xf32>
    %161 = vector.shape_cast %160 : vector<28xf32> to vector<28x1xf32>
    %cst_36 = arith.constant 3.200000e+01 : f32
    %162 = vector.broadcast %cst_36 : f32 to vector<28x1xf32>
    %163 = arith.divf %161, %162 : vector<28x1xf32>
    %164 = vector.broadcast %156 : vector<28x1xf32> to vector<28x32xf32>
    %165 = arith.subf %152, %164 : vector<28x32xf32>
    %cst_37 = arith.constant 9.99999974E-6 : f32
    %166 = vector.broadcast %cst_37 : f32 to vector<28x1xf32>
    %167 = arith.addf %163, %166 : vector<28x1xf32>
    %168 = math.rsqrt %167 : vector<28x1xf32>
    %169 = vector.broadcast %168 : vector<28x1xf32> to vector<28x32xf32>
    %170 = arith.mulf %165, %169 : vector<28x32xf32>
    %171 = vector.broadcast %148 : vector<1x32xf32> to vector<28x32xf32>
    %172 = arith.mulf %170, %171 : vector<28x32xf32>
    %173 = vector.broadcast %149 : vector<1x32xf32> to vector<28x32xf32>
    %174 = arith.addf %172, %173 : vector<28x32xf32>
    %c96 = arith.constant 96 : index
    %c0_38 = arith.constant 0 : index
    %175 = vector.load %arg1[%c96, %c0_38] : memref<264x128xf32, #tpu.memory_space<vmem>>, vector<32x32xf32>
    %c96_39 = arith.constant 96 : index
    %c32_40 = arith.constant 32 : index
    %176 = vector.load %arg1[%c96_39, %c32_40] : memref<264x128xf32, #tpu.memory_space<vmem>>, vector<32x32xf32>
    %177 = vector.extract_strided_slice %111 {offsets = [1, 0], sizes = [1, 32], strides = [1, 1]} : vector<8x128xf32> to vector<1x32xf32>
    %178 = vector.extract_strided_slice %111 {offsets = [2, 0], sizes = [1, 32], strides = [1, 1]} : vector<8x128xf32> to vector<1x32xf32>
    %cst_41 = arith.constant dense<0.000000e+00> : vector<28x32xf32>
    %179 = tpu.matmul %174, %175, %cst_41 {dimension_numbers = #tpu.dot_dimension_numbers<[1], [0], [0], [1], [0, 0, 1, 1], [], []>} : vector<28x32xf32>, vector<32x32xf32>, vector<28x32xf32> -> vector<28x32xf32>
    %180 = vector.broadcast %177 : vector<1x32xf32> to vector<28x32xf32>
    %181 = arith.addf %179, %180 : vector<28x32xf32>
    %cst_42 = arith.constant 0.000000e+00 : f32
    %182 = vector.broadcast %cst_42 : f32 to vector<28x32xf32>
    %183 = arith.maximumf %181, %182 : vector<28x32xf32>
    %cst_43 = arith.constant dense<0.000000e+00> : vector<28x32xf32>
    %184 = tpu.matmul %183, %176, %cst_43 {dimension_numbers = #tpu.dot_dimension_numbers<[1], [0], [0], [1], [0, 0, 1, 1], [], []>} : vector<28x32xf32>, vector<32x32xf32>, vector<28x32xf32> -> vector<28x32xf32>
    %185 = vector.broadcast %178 : vector<1x32xf32> to vector<28x32xf32>
    %186 = arith.addf %184, %185 : vector<28x32xf32>
    %187 = arith.addf %174, %186 : vector<28x32xf32>
    %cst_44 = arith.constant dense<0.000000e+00> : vector<28xf32>
    %188 = vector.multi_reduction <add>, %187, %cst_44 [1] : vector<28x32xf32> to vector<28xf32>
    %189 = vector.shape_cast %188 : vector<28xf32> to vector<28x1xf32>
    %cst_45 = arith.constant 3.200000e+01 : f32
    %190 = vector.broadcast %cst_45 : f32 to vector<28x1xf32>
    %191 = arith.divf %189, %190 : vector<28x1xf32>
    %192 = vector.broadcast %191 : vector<28x1xf32> to vector<28x32xf32>
    %193 = arith.subf %187, %192 : vector<28x32xf32>
    %194 = arith.mulf %193, %193 : vector<28x32xf32>
    %cst_46 = arith.constant dense<0.000000e+00> : vector<28xf32>
    %195 = vector.multi_reduction <add>, %194, %cst_46 [1] : vector<28x32xf32> to vector<28xf32>
    %196 = vector.shape_cast %195 : vector<28xf32> to vector<28x1xf32>
    %cst_47 = arith.constant 3.200000e+01 : f32
    %197 = vector.broadcast %cst_47 : f32 to vector<28x1xf32>
    %198 = arith.divf %196, %197 : vector<28x1xf32>
    %199 = vector.broadcast %191 : vector<28x1xf32> to vector<28x32xf32>
    %200 = arith.subf %187, %199 : vector<28x32xf32>
    %cst_48 = arith.constant 9.99999974E-6 : f32
    %201 = vector.broadcast %cst_48 : f32 to vector<28x1xf32>
    %202 = arith.addf %198, %201 : vector<28x1xf32>
    %203 = math.rsqrt %202 : vector<28x1xf32>
    %204 = vector.broadcast %203 : vector<28x1xf32> to vector<28x32xf32>
    %205 = arith.mulf %200, %204 : vector<28x32xf32>
    %206 = vector.broadcast %150 : vector<1x32xf32> to vector<28x32xf32>
    %207 = arith.mulf %205, %206 : vector<28x32xf32>
    %208 = vector.broadcast %151 : vector<1x32xf32> to vector<28x32xf32>
    %209 = arith.addf %207, %208 : vector<28x32xf32>
    %c192 = arith.constant 192 : index
    %c0_49 = arith.constant 0 : index
    %210 = vector.load %arg1[%c192, %c0_49] : memref<264x128xf32, #tpu.memory_space<vmem>>, vector<32x42xf32>
    %c224 = arith.constant 224 : index
    %c0_50 = arith.constant 0 : index
    %211 = vector.load %arg1[%c224, %c0_50] : memref<264x128xf32, #tpu.memory_space<vmem>>, vector<14x42xf32>
    %c256 = arith.constant 256 : index
    %c0_51 = arith.constant 0 : index
    %212 = vector.load %arg1[%c256, %c0_51] : memref<264x128xf32, #tpu.memory_space<vmem>>, vector<1x42xf32>
    %cst_52 = arith.constant dense<0.000000e+00> : vector<28x42xf32>
    %213 = tpu.matmul %209, %210, %cst_52 {dimension_numbers = #tpu.dot_dimension_numbers<[1], [0], [0], [1], [0, 0, 1, 1], [], []>} : vector<28x32xf32>, vector<32x42xf32>, vector<28x42xf32> -> vector<28x42xf32>
    %214 = vector.extract_strided_slice %213 {offsets = [0, 0], sizes = [14, 42], strides = [1, 1]} : vector<28x42xf32> to vector<14x42xf32>
    %215 = arith.mulf %214, %211 : vector<14x42xf32>
    %cst_53 = arith.constant dense<0.000000e+00> : vector<42xf32>
    %216 = vector.multi_reduction <add>, %215, %cst_53 [0] : vector<14x42xf32> to vector<42xf32>
    %217 = vector.shape_cast %216 : vector<42xf32> to vector<1x42xf32>
    %218 = vector.extract_strided_slice %213 {offsets = [14, 0], sizes = [14, 42], strides = [1, 1]} : vector<28x42xf32> to vector<14x42xf32>
    %219 = arith.mulf %218, %211 : vector<14x42xf32>
    %cst_54 = arith.constant dense<0.000000e+00> : vector<42xf32>
    %220 = vector.multi_reduction <add>, %219, %cst_54 [0] : vector<14x42xf32> to vector<42xf32>
    %221 = vector.shape_cast %220 : vector<42xf32> to vector<1x42xf32>
    %222 = tpu.concatenate %217, %221 in 0 : vector<1x42xf32>, vector<1x42xf32> -> vector<2x42xf32>
    %223 = vector.broadcast %212 : vector<1x42xf32> to vector<2x42xf32>
    %224 = arith.addf %222, %223 : vector<2x42xf32>
    %c0_55 = arith.constant 0 : index
    %c0_56 = arith.constant 0 : index
    %225 = vector.load %arg2[%c0_55, %c0_56] : memref<2x42xf32, #tpu.memory_space<vmem>>, vector<2x42xf32>
    tpu.vector_store %arg2[%c0_55, %c0_56], %224 {strides = array<i32>} : memref<2x42xf32, #tpu.memory_space<vmem>>, vector<2x42xf32>,
    return
  }
}

</mosaic_0001>

<llo_original>
// kernel: mhcac_forward.1
$region0: #{mhcac_forward.1}
  #allocation0 [shape = 'u32[]', space=smem, size = 0x4, offset = 0x4, fixed_abs, tag = 'smem constant byte address 0x4 - core index']
  #allocation1 [shape = 'u32[144,128]{1,0:T(1,128)}', space=vmem, size = 0x12000, scoped, tag = 'internal scratch']
  %s0 = inlined_call_operand.hbm [shape: f32[2,32], index: 0, kind: input, shape index: {}]
  %s1 = inlined_call_operand.hbm [shape: f32[264,128], index: 1, kind: input, shape index: {}]
  %s2 = inlined_call_operand.vmem [shape: f32[2,42], index: 2, kind: output, shape index: {}]
  %s3 = sld [smem:[#allocation0]]
  $region26: #{mhcac_forward.1} parent=0
    _
  %s5 = ssub.s32 1, %s3
  %s6 = scalar_select 0, %s5, %s3
  $region1: #{mhcac_forward.1} parent=0
    #allocation2 [shape = 'u8[1024]{0}', space=vmem, size = 0x400, scoped, tag = 'input window, operand 0, single buffered']
    #allocation3 [shape = 's32[1]{0}', space=sflag, size = 0x4, scoped, tag = 'scoped memory for mhcac_forward.1']
    #allocation4 [shape = 'u8[135168]{0}', space=vmem, size = 0x21000, scoped, tag = 'input window, operand 1, single buffered']
    #allocation5 [shape = 's32[1]{0}', space=sflag, size = 0x4, scoped, tag = 'scoped memory for mhcac_forward.1']
    %7 = vsyncpa [#allocation3], 0
    %8 = vsyncpa [#allocation5], 0
    // Predicated region
    $region2: #{mhcac_forward.1} parent=1 // pred_check
      _
    $region3: #{mhcac_forward.1} parent=1 // pred_check_branch
      %10 = sbr.rel (0) target = $region5
    $region4: #{mhcac_forward.1} parent=1 // pred_region
      %s12 = ssub.s32 32, 32
      %13 = vsyncadd [#allocation3], %s12
      %s15 = sshll.u32 [#allocation2], 4
      %s16 = int_to_ptr.vmem [resolvable:$true] %s15
      %18 = dma.hbm_to_vmem [thread:$0]  %s0, 32, %s16, [#allocation3]
    $region5: #{mhcac_forward.1} parent=1 // pred_fallthru
      _
    // Predicated region
    $region6: #{mhcac_forward.1} parent=1 // pred_check
      _
    $region7: #{mhcac_forward.1} parent=1 // pred_check_branch
      %20 = sbr.rel (0) target = $region9
    $region8: #{mhcac_forward.1} parent=1 // pred_region
      %s22 = ssub.s32 4224, 4224
      %23 = vsyncadd [#allocation5], %s22
      %s24 = sshll.u32 [#allocation4], 4
      %s25 = int_to_ptr.vmem [resolvable:$true] %s24
      %30 = dma.hbm_to_vmem [thread:$0]  %s1, 4224, %s25, [#allocation5], 128, 128, 8
    $region9: #{mhcac_forward.1} parent=1 // pred_fallthru
      _
    // Predicated region
    $region10: #{mhcac_forward.1} parent=1 // pred_check
      _
    $region11: #{mhcac_forward.1} parent=1 // pred_check_branch
      %32 = sbr.rel (0) target = $region13
    $region12: #{mhcac_forward.1} parent=1 // pred_region
      %33 = dma.done [#allocation3], 32
    $region13: #{mhcac_forward.1} parent=1 // pred_fallthru
      _
    // Predicated region
    $region14: #{mhcac_forward.1} parent=1 // pred_check
      _
    $region15: #{mhcac_forward.1} parent=1 // pred_check_branch
      %35 = sbr.rel (0) target = $region17
    $region16: #{mhcac_forward.1} parent=1 // pred_region
      %36 = dma.done [#allocation5], 4224
    $region17: #{mhcac_forward.1} parent=1 // pred_fallthru
      _
    %v37 = vld [vmem:[#allocation2] sm:$0x3]
    %v38 = vlaneseq
    %v39 = vshrl.u32 %v38, 7
    %v40 = vsub.s32 0, %v39
    %v41 = vrot.slane %v37, %v40
    %v42 = vlaneseq
    %v43 = vshrl.u32 %v42, 7
    %v44 = vsub.s32 1, %v43
    %v45 = vrot.slane %v37, %v44
    %vm48 = vcmask 1045504
    %v49 = vsel %vm48, %v41, %v45
    %v50 = vld [vmem:[#allocation4 + $0x80] sm:$0xff]
    %v51 = vld [vmem:[#allocation4 + $0x88] sm:$0xff]
    %v52 = vld [vmem:[#allocation4 + $0x90] sm:$0xff]
    %v53 = vld [vmem:[#allocation4 + $0x98] sm:$0xff]
    %v54 = vld [vmem:[#allocation4 + $0xa0] sm:$0xff]
    %v55 = vld [vmem:[#allocation4 + $0xa8] sm:$0xff]
    %v56 = vld [vmem:[#allocation4 + $0xb0] sm:$0xff]
    %v57 = vld [vmem:[#allocation4] sm:$0xff]
    %v58 = vld [vmem:[#allocation4 + $0x8] sm:$0xff]
    %v59 = vld [vmem:[#allocation4 + $0x10] sm:$0xff]
    %v60 = vld [vmem:[#allocation4 + $0x18] sm:$0xff]
    %v61 = vld [vmem:[#allocation4 + $0xf0] sm:$0xff]
    %v62 = vlaneseq
    %v63 = vshrl.u32 %v62, 7
    %v64 = vsub.s32 0, %v63
    %v65 = vrot.slane %v61, %v64
    %vm66 = vcmask 261120
    %v67 = vsel %vm66, %v41, 0
    %v70 = vsel %vm66, %v49, 0
    %v72 = vsel %vm66, %v45, 0
    %74 = vmatprep.subr.mxu0 0.0
    %75 = vmatpush1.msra.mxu0 0.0
    %76 = vmatprep.subr.mxu0 0.0
    %77 = vmatpush1.msra.mxu0 0.0
    %78 = vmatprep.subr.mxu0 0.0
    %79 = vmatpush1.msra.mxu0 0.0
    %80 = vmatprep.subr.mxu0 0.0
    %81 = vmatpush1.msra.mxu0 0.0
    %82 = vmatprep.subr.mxu0 0.0
    %83 = vmatpush1.msra.mxu0 0.0
    %84 = vmatprep.subr.mxu0 0.0
    %85 = vmatpush1.msra.mxu0 0.0
    %86 = vmatprep.subr.mxu0 0.0
    %87 = vmatpush1.msra.mxu0 0.0
    %88 = vmatprep.subr.mxu0 0.0
    %89 = vmatpush1.msra.mxu0 0.0
    %90 = vmatprep.subr.mxu0 0.0
    %91 = vmatpush1.msra.mxu0 0.0
    %92 = vmatprep.subr.mxu0 0.0
    %93 = vmatpush1.msra.mxu0 0.0
    %94 = vmatprep.subr.mxu0 0.0
    %95 = vmatpush1.msra.mxu0 0.0
    %96 = vmatprep.subr.mxu0 0.0
    %97 = vmatpush1.msra.mxu0 0.0
    %98 = vmatprep.subr.mxu0 0.0
    %99 = vmatpush1.msra.mxu0 %v60
    %100 = vmatprep.subr.mxu0 0.0
    %101 = vmatpush1.msra.mxu0 %v59
    %102 = vmatprep.subr.mxu0 0.0
    %103 = vmatpush1.msra.mxu0 %v58
    %104 = vmatprep.subr.mxu0 0.0
    %105 = vmatpush1.msra.mxu0 %v57
    %106 = vmatprep.subr.mxu0 0.0
    %107 = vmatpush2.msra.mxu0 0.0
    %108 = vmatprep.subr.mxu0 0.0
    %109 = vmatpush2.msra.mxu0 0.0
    %110 = vmatprep.subr.mxu0 0.0
    %111 = vmatpush2.msra.mxu0 0.0
    %112 = vmatprep.subr.mxu0 0.0
    %113 = vmatpush2.msra.mxu0 0.0
    %114 = vmatprep.subr.mxu0 0.0
    %115 = vmatpush2.msra.mxu0 0.0
    %116 = vmatprep.subr.mxu0 0.0
    %117 = vmatpush2.msra.mxu0 0.0
    %118 = vmatprep.subr.mxu0 0.0
    %119 = vmatpush2.msra.mxu0 0.0
    %120 = vmatprep.subr.mxu0 0.0
    %121 = vmatpush2.msra.mxu0 0.0
    %122 = vmatprep.subr.mxu0 0.0
    %123 = vmatpush2.msra.mxu0 0.0
    %124 = vmatprep.subr.mxu0 0.0
    %125 = vmatpush2.msra.mxu0 0.0
    %126 = vmatprep.subr.mxu0 0.0
    %127 = vmatpush2.msra.mxu0 0.0
    %128 = vmatprep.subr.mxu0 0.0
    %129 = vmatpush2.msra.mxu0 0.0
    %130 = vmatprep.subr.mxu0 0.0
    %131 = vmatpush2.msra.mxu0 0.0
    %132 = vmatprep.subr.mxu0 0.0
    %133 = vmatpush2.msra.mxu0 0.0
    %134 = vmatprep.subr.mxu0 0.0
    %135 = vmatpush2.msra.mxu0 0.0
    %136 = vmatprep.subr.mxu0 0.0
    %137 = vmatpush2.msra.mxu0 0.0
    %138 = vmatprep.mubr.f32.mxu0 0.0
    %139 = vmatmul.mubr.f32.gmra.mxu0 %v67
    %v140 = vpop.f32.mrf.mxu0
    %v141 = vadd.f32 %v65, %v140
    %v142 = vpop.f32.mrf.mxu0
    %143 = vmatprep.mubr.f32.mxu0 0.0
    %144 = vmatmul.mubr.f32.gmra.mxu0 %v70
    %v145 = vpop.f32.mrf.mxu0
    %v146 = vadd.f32 %v65, %v145
    %v147 = vpop.f32.mrf.mxu0
    %148 = vmatprep.mubr.f32.mxu0 0.0
    %149 = vmatmul.mubr.f32.gmra.mxu0 %v72
    %v150 = vpop.f32.mrf.mxu0
    %v151 = vadd.f32 %v65, %v150
    %v152 = vpop.f32.mrf.mxu0
    %153 = vmatprep.mubr.f32.mxu0 0.0
    %154 = vmatmul.mubr.f32.gmra.mxu0 %v72
    %v155 = vpop.f32.mrf.mxu0
    %v156 = vadd.f32 %v65, %v155
    %v157 = vpop.f32.mrf.mxu0
    %158 = vdwg.mxu0
    %vm159 = vcmask 720128
    %v160 = vsel %vm159, %v141, -inf
    %161 = vmax.xlane.f32.xlu0 %v160
    %v162 = vpop.xlane.xlu0 %161
    %v163 = vsel %vm159, %v146, -inf
    %164 = vmax.xlane.f32.xlu0 %v163
    %v165 = vpop.xlane.xlu0 %164
    %v166 = vsel %vm159, %v151, -inf
    %167 = vmax.xlane.f32.xlu0 %v166
    %v168 = vpop.xlane.xlu0 %167
    %vm169 = vcmask 716032
    %v170 = vsel %vm169, %v156, -inf
    %171 = vmax.xlane.f32.xlu0 %v170
    %v172 = vpop.xlane.xlu0 %171
    %v173 = vsub.f32 %v141, %v162
    %v174 = vsub.f32 %v146, %v165
    %v175 = vsub.f32 %v151, %v168
    %v176 = vsub.f32 %v156, %v172
    %v177 = vmul.f32 %v173, 1.442695
    %v178 = vpow.pop %v177
    %v179 = vmul.f32 %v174, 1.442695
    %v180 = vpow.pop %v179
    %v181 = vmul.f32 %v175, 1.442695
    %v182 = vpow.pop %v181
    %v183 = vmul.f32 %v176, 1.442695
    %v184 = vpow.pop %v183
    %189 = vrot.lane.b32.xlu0 %v178, 96
    %v190 = vpop.permute.xlu0 %189
    %191 = vrot.lane.b32.xlu0 %v180, 96
    %v192 = vpop.permute.xlu0 %191
    %193 = vrot.lane.b32.xlu0 %v182, 96
    %v194 = vpop.permute.xlu0 %193
    %195 = vrot.lane.b32.xlu0 %v184, 96
    %v196 = vpop.permute.xlu0 %195
    %vm197 = vcmask 457728
    %v198 = vsel %vm197, %v190, 0
    %v200 = vsel %vm197, %v192, 0
    %v202 = vsel %vm197, %v194, 0
    %v204 = vsel %vm197, %v196, 0
    %206 = vmatprep.subr.mxu0 0.0
    %207 = vmatpush1.msra.mxu0 0.0
    %208 = vmatprep.subr.mxu0 0.0
    %209 = vmatpush1.msra.mxu0 0.0
    %210 = vmatprep.subr.mxu0 0.0
    %211 = vmatpush1.msra.mxu0 0.0
    %212 = vmatprep.subr.mxu0 0.0
    %213 = vmatpush1.msra.mxu0 0.0
    %214 = vmatprep.subr.mxu0 0.0
    %215 = vmatpush1.msra.mxu0 0.0
    %216 = vmatprep.subr.mxu0 0.0
    %217 = vmatpush1.msra.mxu0 0.0
    %218 = vmatprep.subr.mxu0 0.0
    %219 = vmatpush1.msra.mxu0 0.0
    %220 = vmatprep.subr.mxu0 0.0
    %221 = vmatpush1.msra.mxu0 0.0
    %222 = vmatprep.subr.mxu0 0.0
    %223 = vmatpush1.msra.mxu0 0.0
    %224 = vmatprep.subr.mxu0 0.0
    %225 = vmatpush1.msra.mxu0 %v56
    %226 = vmatprep.subr.mxu0 0.0
    %227 = vmatpush1.msra.mxu0 %v55
    %228 = vmatprep.subr.mxu0 0.0
    %229 = vmatpush1.msra.mxu0 %v54
    %230 = vmatprep.subr.mxu0 0.0
    %231 = vmatpush1.msra.mxu0 %v53
    %232 = vmatprep.subr.mxu0 0.0
    %233 = vmatpush1.msra.mxu0 %v52
    %234 = vmatprep.subr.mxu0 0.0
    %235 = vmatpush1.msra.mxu0 %v51
    %236 = vmatprep.subr.mxu0 0.0
    %237 = vmatpush1.msra.mxu0 %v50
    %238 = vmatprep.subr.mxu0 0.0
    %239 = vmatpush2.msra.mxu0 0.0
    %240 = vmatprep.subr.mxu0 0.0
    %241 = vmatpush2.msra.mxu0 0.0
    %242 = vmatprep.subr.mxu0 0.0
    %243 = vmatpush2.msra.mxu0 0.0
    %244 = vmatprep.subr.mxu0 0.0
    %245 = vmatpush2.msra.mxu0 0.0
    %246 = vmatprep.subr.mxu0 0.0
    %247 = vmatpush2.msra.mxu0 0.0
    %248 = vmatprep.subr.mxu0 0.0
    %249 = vmatpush2.msra.mxu0 0.0
    %250 = vmatprep.subr.mxu0 0.0
    %251 = vmatpush2.msra.mxu0 0.0
    %252 = vmatprep.subr.mxu0 0.0
    %253 = vmatpush2.msra.mxu0 0.0
    %254 = vmatprep.subr.mxu0 0.0
    %255 = vmatpush2.msra.mxu0 0.0
    %256 = vmatprep.subr.mxu0 0.0
    %257 = vmatpush2.msra.mxu0 0.0
    %258 = vmatprep.subr.mxu0 0.0
    %259 = vmatpush2.msra.mxu0 0.0
    %260 = vmatprep.subr.mxu0 0.0
    %261 = vmatpush2.msra.mxu0 0.0
    %262 = vmatprep.subr.mxu0 0.0
    %263 = vmatpush2.msra.mxu0 0.0
    %264 = vmatprep.subr.mxu0 0.0
    %265 = vmatpush2.msra.mxu0 0.0
    %266 = vmatprep.subr.mxu0 0.0
    %267 = vmatpush2.msra.mxu0 0.0
    %268 = vmatprep.subr.mxu0 0.0
    %269 = vmatpush2.msra.mxu0 0.0
    %270 = vmatprep.mubr.f32.mxu0 0.0
    %271 = vmatmul.mubr.f32.gmra.mxu0 %v198
    %v272 = vpop.f32.mrf.mxu0
    %v273 = vadd.f32 0.0, %v272
    %v274 = vpop.f32.mrf.mxu0
    %275 = vmatprep.mubr.f32.mxu0 0.0
    %276 = vmatmul.mubr.f32.gmra.mxu0 %v200
    %v277 = vpop.f32.mrf.mxu0
    %v278 = vadd.f32 0.0, %v277
    %v279 = vpop.f32.mrf.mxu0
    %280 = vmatprep.mubr.f32.mxu0 0.0
    %281 = vmatmul.mubr.f32.gmra.mxu0 %v202
    %v282 = vpop.f32.mrf.mxu0
    %v283 = vadd.f32 0.0, %v282
    %v284 = vpop.f32.mrf.mxu0
    %285 = vmatprep.mubr.f32.mxu0 0.0
    %286 = vmatmul.mubr.f32.gmra.mxu0 %v204
    %v287 = vpop.f32.mrf.mxu0
    %v288 = vadd.f32 0.0, %v287
    %v289 = vpop.f32.mrf.mxu0
    %290 = vdwg.mxu0
    %295 = vrot.lane.b32.xlu0 %v273, 32
    %v296 = vpop.permute.xlu0 %295
    %297 = vrot.lane.b32.xlu0 %v278, 32
    %v298 = vpop.permute.xlu0 %297
    %299 = vrot.lane.b32.xlu0 %v283, 32
    %v300 = vpop.permute.xlu0 %299
    %301 = vrot.lane.b32.xlu0 %v288, 32
    %v302 = vpop.permute.xlu0 %301
    %v307 = vrcp.pop %v296
    %v308 = vmul.f32 %v178, %v307
    %v309 = vrcp.pop %v298
    %v310 = vmul.f32 %v180, %v309
    %v311 = vrcp.pop %v300
    %v312 = vmul.f32 %v182, %v311
    %v313 = vrcp.pop %v302
    %v314 = vmul.f32 %v184, %v313
    %317 = vrot.lane.b32.xlu0 %v308, 96
    %v318 = vpop.permute.xlu0 %317
    %319 = vrot.lane.b32.xlu0 %v310, 96
    %v320 = vpop.permute.xlu0 %319
    %323 = vxpose.xlu0.b32.start [1/16] %v318, 128
    %324 = vxpose.xlu0.b32.cont [2/16] %v320, 128
    %325 = vxpose.xlu0.b32.cont [3/16] 0.0, 128
    %326 = vxpose.xlu0.b32.cont [4/16] 0.0, 128
    %327 = vxpose.xlu0.b32.cont [5/16] 0.0, 128
    %328 = vxpose.xlu0.b32.cont [6/16] 0.0, 128
    %329 = vxpose.xlu0.b32.cont [7/16] 0.0, 128
    %330 = vxpose.xlu0.b32.cont [8/16] 0.0, 128
    %331 = vxpose.xlu0.b32.cont [9/16] 0.0, 128
    %332 = vxpose.xlu0.b32.cont [10/16] 0.0, 128
    %333 = vxpose.xlu0.b32.cont [11/16] 0.0, 128
    %334 = vxpose.xlu0.b32.cont [12/16] 0.0, 128
    %335 = vxpose.xlu0.b32.cont [13/16] 0.0, 128
    %336 = vxpose.xlu0.b32.cont [14/16] 0.0, 128
    %337 = vxpose.xlu0.b32.cont [15/16] 0.0, 128
    %338 = vxpose.xlu0.b32.end [16/16] 0.0, 128
    %v339 = vpop.trf.xlu0
    %v340 = vpop.trf.xlu0
    %v341 = vpop.trf.xlu0
    %v342 = vpop.trf.xlu0
    %v343 = vpop.trf.xlu0
    %v344 = vpop.trf.xlu0
    %v345 = vpop.trf.xlu0
    %v346 = vpop.trf.xlu0
    %v347 = vpop.trf.xlu0
    %v348 = vpop.trf.xlu0
    %v349 = vpop.trf.xlu0
    %v350 = vpop.trf.xlu0
    %v351 = vpop.trf.xlu0
    %v352 = vpop.trf.xlu0
    %v353 = vpop.trf.xlu0
    %v354 = vpop.trf.xlu0
    %vm355 = vcmask 113664
    %v357 = vsel %vm355, %v339, 0
    %v360 = vsel %vm355, %v340, 0
    %v363 = vsel %vm355, %v341, 0
    %v366 = vsel %vm355, %v342, 0
    %v369 = vsel %vm355, %v343, 0
    %v372 = vsel %vm355, %v344, 0
    %v375 = vsel %vm355, %v345, 0
    %v378 = vsel %vm48, %v146, 0
    %380 = vmatprep.subr.mxu0 0.0
    %381 = vmatpush1.msra.mxu0 0.0
    %382 = vmatprep.subr.mxu0 0.0
    %383 = vmatpush1.msra.mxu0 0.0
    %384 = vmatprep.subr.mxu0 0.0
    %385 = vmatpush1.msra.mxu0 0.0
    %386 = vmatprep.subr.mxu0 0.0
    %387 = vmatpush1.msra.mxu0 0.0
    %388 = vmatprep.subr.mxu0 0.0
    %389 = vmatpush1.msra.mxu0 0.0
    %390 = vmatprep.subr.mxu0 0.0
    %391 = vmatpush1.msra.mxu0 0.0
    %392 = vmatprep.subr.mxu0 0.0
    %393 = vmatpush1.msra.mxu0 0.0
    %394 = vmatprep.subr.mxu0 0.0
    %395 = vmatpush1.msra.mxu0 0.0
    %396 = vmatprep.subr.mxu0 0.0
    %397 = vmatpush1.msra.mxu0 0.0
    %398 = vmatprep.subr.mxu0 0.0
    %399 = vmatpush1.msra.mxu0 0.0
    %400 = vmatprep.subr.mxu0 0.0
    %401 = vmatpush1.msra.mxu0 0.0
    %402 = vmatprep.subr.mxu0 0.0
    %403 = vmatpush1.msra.mxu0 0.0
    %404 = vmatprep.subr.mxu0 0.0
    %405 = vmatpush1.msra.mxu0 0.0
    %406 = vmatprep.subr.mxu0 0.0
    %407 = vmatpush1.msra.mxu0 0.0
    %408 = vmatprep.subr.mxu0 0.0
    %409 = vmatpush1.msra.mxu0 %v378
    %410 = vmatprep.subr.mxu0 0.0
    %411 = vmatpush1.msra.mxu0 %v141
    %412 = vmatprep.subr.mxu0 0.0
    %413 = vmatpush2.msra.mxu0 0.0
    %414 = vmatprep.subr.mxu0 0.0
    %415 = vmatpush2.msra.mxu0 0.0
    %416 = vmatprep.subr.mxu0 0.0
    %417 = vmatpush2.msra.mxu0 0.0
    %418 = vmatprep.subr.mxu0 0.0
    %419 = vmatpush2.msra.mxu0 0.0
    %420 = vmatprep.subr.mxu0 0.0
    %421 = vmatpush2.msra.mxu0 0.0
    %422 = vmatprep.subr.mxu0 0.0
    %423 = vmatpush2.msra.mxu0 0.0
    %424 = vmatprep.subr.mxu0 0.0
    %425 = vmatpush2.msra.mxu0 0.0
    %426 = vmatprep.subr.mxu0 0.0
    %427 = vmatpush2.msra.mxu0 0.0
    %428 = vmatprep.subr.mxu0 0.0
    %429 = vmatpush2.msra.mxu0 0.0
    %430 = vmatprep.subr.mxu0 0.0
    %431 = vmatpush2.msra.mxu0 0.0
    %432 = vmatprep.subr.mxu0 0.0
    %433 = vmatpush2.msra.mxu0 0.0
    %434 = vmatprep.subr.mxu0 0.0
    %435 = vmatpush2.msra.mxu0 0.0
    %436 = vmatprep.subr.mxu0 0.0
    %437 = vmatpush2.msra.mxu0 0.0
    %438 = vmatprep.subr.mxu0 0.0
    %439 = vmatpush2.msra.mxu0 0.0
    %440 = vmatprep.subr.mxu0 0.0
    %441 = vmatpush2.msra.mxu0 0.0
    %442 = vmatprep.subr.mxu0 0.0
    %443 = vmatpush2.msra.mxu0 0.0
    %444 = vmatprep.mubr.f32.mxu0 0.0
    %445 = vmatmul.mubr.f32.gmra.mxu0 %v357
    %v446 = vpop.f32.mrf.mxu0
    %v447 = vadd.f32 0.0, %v446
    %v448 = vpop.f32.mrf.mxu0
    %449 = vmatprep.mubr.f32.mxu0 0.0
    %450 = vmatmul.mubr.f32.gmra.mxu0 %v360
    %v451 = vpop.f32.mrf.mxu0
    %v452 = vadd.f32 0.0, %v451
    %v453 = vpop.f32.mrf.mxu0
    %454 = vmatprep.mubr.f32.mxu0 0.0
    %455 = vmatmul.mubr.f32.gmra.mxu0 %v363
    %v456 = vpop.f32.mrf.mxu0
    %v457 = vadd.f32 0.0, %v456
    %v458 = vpop.f32.mrf.mxu0
    %459 = vmatprep.mubr.f32.mxu0 0.0
    %460 = vmatmul.mubr.f32.gmra.mxu0 %v366
    %v461 = vpop.f32.mrf.mxu0
    %v462 = vadd.f32 0.0, %v461
    %v463 = vpop.f32.mrf.mxu0
    %464 = vmatprep.mubr.f32.mxu0 0.0
    %465 = vmatmul.mubr.f32.gmra.mxu0 %v369
    %v466 = vpop.f32.mrf.mxu0
    %v467 = vadd.f32 0.0, %v466
    %v468 = vpop.f32.mrf.mxu0
    %469 = vmatprep.mubr.f32.mxu0 0.0
    %470 = vmatmul.mubr.f32.gmra.mxu0 %v372
    %v471 = vpop.f32.mrf.mxu0
    %v472 = vadd.f32 0.0, %v471
    %v473 = vpop.f32.mrf.mxu0
    %474 = vmatprep.mubr.f32.mxu0 0.0
    %475 = vmatmul.mubr.f32.gmra.mxu0 %v375
    %v476 = vpop.f32.mrf.mxu0
    %v477 = vadd.f32 0.0, %v476
    %v478 = vpop.f32.mrf.mxu0
    %479 = vdwg.mxu0
    %487 = vrot.lane.b32.xlu0 %v50, 72
    %v488 = vpop.permute.xlu0 %487
    %489 = vrot.lane.b32.xlu0 %v51, 72
    %v490 = vpop.permute.xlu0 %489
    %491 = vrot.lane.b32.xlu0 %v52, 72
    %v492 = vpop.permute.xlu0 %491
    %493 = vrot.lane.b32.xlu0 %v53, 72
    %v494 = vpop.permute.xlu0 %493
    %495 = vrot.lane.b32.xlu0 %v54, 72
    %v496 = vpop.permute.xlu0 %495
    %497 = vrot.lane.b32.xlu0 %v55, 72
    %v498 = vpop.permute.xlu0 %497
    %499 = vrot.lane.b32.xlu0 %v56, 72
    %v500 = vpop.permute.xlu0 %499
    %v508 = vmul.f32 %v447, %v488
    %v509 = vmul.f32 %v452, %v490
    %v510 = vmul.f32 %v457, %v492
    %v511 = vmul.f32 %v462, %v494
    %v512 = vmul.f32 %v467, %v496
    %v513 = vmul.f32 %v472, %v498
    %v514 = vmul.f32 %v477, %v500
    %vm518 = vcmask 1041408
    %v519 = vrot.slane %v509, 6
    %v520 = vrot.slane %v510, 6
    %v521 = vsel %vm518, %v519, %v520
    %v522 = vrot.slane %v511, 6
    %v523 = vsel %vm518, %v520, %v522
    %v526 = vadd.f32 %v508, %v521
    %v527 = vadd.f32 %v509, %v523
    %vm530 = vcmask 1043456
    %v531 = vrot.slane %v511, 4
    %v532 = vrot.slane %v512, 4
    %v533 = vsel %vm530, %v531, %v532
    %v534 = vrot.slane %v513, 4
    %v535 = vsel %vm530, %v532, %v534
    %v538 = vadd.f32 %v526, %v533
    %v539 = vadd.f32 %v527, %v535
    %v541 = vrot.slane %v513, 2
    %v542 = vrot.slane %v514, 2
    %v543 = vsel %vm48, %v541, %v542
    %v546 = vadd.f32 %v538, %v543
    %v547 = vadd.f32 %v539, %v542
    %v550 = vrot.slane %v310, 6
    %v551 = vrot.slane %v312, 6
    %v552 = vsel %vm518, %v550, %v551
    %v553 = vrot.slane %v314, 6
    %v554 = vsel %vm518, %v551, %v553
    %555 = vrot.lane.b32.xlu0 %v552, 96
    %v556 = vpop.permute.xlu0 %555
    %557 = vrot.lane.b32.xlu0 %v554, 96
    %v558 = vpop.permute.xlu0 %557
    %561 = vxpose.xlu0.b32.start [1/16] %v556, 128
    %562 = vxpose.xlu0.b32.cont [2/16] %v558, 128
    %563 = vxpose.xlu0.b32.cont [3/16] 0.0, 128
    %564 = vxpose.xlu0.b32.cont [4/16] 0.0, 128
    %565 = vxpose.xlu0.b32.cont [5/16] 0.0, 128
    %566 = vxpose.xlu0.b32.cont [6/16] 0.0, 128
    %567 = vxpose.xlu0.b32.cont [7/16] 0.0, 128
    %568 = vxpose.xlu0.b32.cont [8/16] 0.0, 128
    %569 = vxpose.xlu0.b32.cont [9/16] 0.0, 128
    %570 = vxpose.xlu0.b32.cont [10/16] 0.0, 128
    %571 = vxpose.xlu0.b32.cont [11/16] 0.0, 128
    %572 = vxpose.xlu0.b32.cont [12/16] 0.0, 128
    %573 = vxpose.xlu0.b32.cont [13/16] 0.0, 128
    %574 = vxpose.xlu0.b32.cont [14/16] 0.0, 128
    %575 = vxpose.xlu0.b32.cont [15/16] 0.0, 128
    %576 = vxpose.xlu0.b32.end [16/16] 0.0, 128
    %v577 = vpop.trf.xlu0
    %v578 = vpop.trf.xlu0
    %v579 = vpop.trf.xlu0
    %v580 = vpop.trf.xlu0
    %v581 = vpop.trf.xlu0
    %v582 = vpop.trf.xlu0
    %v583 = vpop.trf.xlu0
    %v584 = vpop.trf.xlu0
    %v585 = vpop.trf.xlu0
    %v586 = vpop.trf.xlu0
    %v587 = vpop.trf.xlu0
    %v588 = vpop.trf.xlu0
    %v589 = vpop.trf.xlu0
    %v590 = vpop.trf.xlu0
    %v591 = vpop.trf.xlu0
    %v592 = vpop.trf.xlu0
    %v595 = vrot.slane %v146, 6
    %v596 = vrot.slane %v151, 6
    %v597 = vsel %vm518, %v595, %v596
    %v598 = vrot.slane %v156, 6
    %v599 = vsel %vm518, %v596, %v598
    %v602 = vsel %vm355, %v577, 0
    %v605 = vsel %vm355, %v578, 0
    %v608 = vsel %vm355, %v579, 0
    %v611 = vsel %vm355, %v580, 0
    %v614 = vsel %vm355, %v581, 0
    %v617 = vsel %vm355, %v582, 0
    %v620 = vsel %vm355, %v583, 0
    %v622 = vsel %vm48, %v599, 0
    %624 = vmatprep.subr.mxu0 0.0
    %625 = vmatpush1.msra.mxu0 0.0
    %626 = vmatprep.subr.mxu0 0.0
    %627 = vmatpush1.msra.mxu0 0.0
    %628 = vmatprep.subr.mxu0 0.0
    %629 = vmatpush1.msra.mxu0 0.0
    %630 = vmatprep.subr.mxu0 0.0
    %631 = vmatpush1.msra.mxu0 0.0
    %632 = vmatprep.subr.mxu0 0.0
    %633 = vmatpush1.msra.mxu0 0.0
    %634 = vmatprep.subr.mxu0 0.0
    %635 = vmatpush1.msra.mxu0 0.0
    %636 = vmatprep.subr.mxu0 0.0
    %637 = vmatpush1.msra.mxu0 0.0
    %638 = vmatprep.subr.mxu0 0.0
    %639 = vmatpush1.msra.mxu0 0.0
    %640 = vmatprep.subr.mxu0 0.0
    %641 = vmatpush1.msra.mxu0 0.0
    %642 = vmatprep.subr.mxu0 0.0
    %643 = vmatpush1.msra.mxu0 0.0
    %644 = vmatprep.subr.mxu0 0.0
    %645 = vmatpush1.msra.mxu0 0.0
    %646 = vmatprep.subr.mxu0 0.0
    %647 = vmatpush1.msra.mxu0 0.0
    %648 = vmatprep.subr.mxu0 0.0
    %649 = vmatpush1.msra.mxu0 0.0
    %650 = vmatprep.subr.mxu0 0.0
    %651 = vmatpush1.msra.mxu0 0.0
    %652 = vmatprep.subr.mxu0 0.0
    %653 = vmatpush1.msra.mxu0 %v622
    %654 = vmatprep.subr.mxu0 0.0
    %655 = vmatpush1.msra.mxu0 %v597
    %656 = vmatprep.subr.mxu0 0.0
    %657 = vmatpush2.msra.mxu0 0.0
    %658 = vmatprep.subr.mxu0 0.0
    %659 = vmatpush2.msra.mxu0 0.0
    %660 = vmatprep.subr.mxu0 0.0
    %661 = vmatpush2.msra.mxu0 0.0
    %662 = vmatprep.subr.mxu0 0.0
    %663 = vmatpush2.msra.mxu0 0.0
    %664 = vmatprep.subr.mxu0 0.0
    %665 = vmatpush2.msra.mxu0 0.0
    %666 = vmatprep.subr.mxu0 0.0
    %667 = vmatpush2.msra.mxu0 0.0
    %668 = vmatprep.subr.mxu0 0.0
    %669 = vmatpush2.msra.mxu0 0.0
    %670 = vmatprep.subr.mxu0 0.0
    %671 = vmatpush2.msra.mxu0 0.0
    %672 = vmatprep.subr.mxu0 0.0
    %673 = vmatpush2.msra.mxu0 0.0
    %674 = vmatprep.subr.mxu0 0.0
    %675 = vmatpush2.msra.mxu0 0.0
    %676 = vmatprep.subr.mxu0 0.0
    %677 = vmatpush2.msra.mxu0 0.0
    %678 = vmatprep.subr.mxu0 0.0
    %679 = vmatpush2.msra.mxu0 0.0
    %680 = vmatprep.subr.mxu0 0.0
    %681 = vmatpush2.msra.mxu0 0.0
    %682 = vmatprep.subr.mxu0 0.0
    %683 = vmatpush2.msra.mxu0 0.0
    %684 = vmatprep.subr.mxu0 0.0
    %685 = vmatpush2.msra.mxu0 0.0
    %686 = vmatprep.subr.mxu0 0.0
    %687 = vmatpush2.msra.mxu0 0.0
    %688 = vmatprep.mubr.f32.mxu0 0.0
    %689 = vmatmul.mubr.f32.gmra.mxu0 %v602
    %v690 = vpop.f32.mrf.mxu0
    %v691 = vadd.f32 0.0, %v690
    %v692 = vpop.f32.mrf.mxu0
    %693 = vmatprep.mubr.f32.mxu0 0.0
    %694 = vmatmul.mubr.f32.gmra.mxu0 %v605
    %v695 = vpop.f32.mrf.mxu0
    %v696 = vadd.f32 0.0, %v695
    %v697 = vpop.f32.mrf.mxu0
    %698 = vmatprep.mubr.f32.mxu0 0.0
    %699 = vmatmul.mubr.f32.gmra.mxu0 %v608
    %v700 = vpop.f32.mrf.mxu0
    %v701 = vadd.f32 0.0, %v700
    %v702 = vpop.f32.mrf.mxu0
    %703 = vmatprep.mubr.f32.mxu0 0.0
    %704 = vmatmul.mubr.f32.gmra.mxu0 %v611
    %v705 = vpop.f32.mrf.mxu0
    %v706 = vadd.f32 0.0, %v705
    %v707 = vpop.f32.mrf.mxu0
    %708 = vmatprep.mubr.f32.mxu0 0.0
    %709 = vmatmul.mubr.f32.gmra.mxu0 %v614
    %v710 = vpop.f32.mrf.mxu0
    %v711 = vadd.f32 0.0, %v710
    %v712 = vpop.f32.mrf.mxu0
    %713 = vmatprep.mubr.f32.mxu0 0.0
    %714 = vmatmul.mubr.f32.gmra.mxu0 %v617
    %v715 = vpop.f32.mrf.mxu0
    %v716 = vadd.f32 0.0, %v715
    %v717 = vpop.f32.mrf.mxu0
    %718 = vmatprep.mubr.f32.mxu0 0.0
    %719 = vmatmul.mubr.f32.gmra.mxu0 %v620
    %v720 = vpop.f32.mrf.mxu0
    %v721 = vadd.f32 0.0, %v720
    %v722 = vpop.f32.mrf.mxu0
    %723 = vdwg.mxu0
    %v724 = vmul.f32 %v691, %v488
    %v725 = vmul.f32 %v696, %v490
    %v726 = vmul.f32 %v701, %v492
    %v727 = vmul.f32 %v706, %v494
    %v728 = vmul.f32 %v711, %v496
    %v729 = vmul.f32 %v716, %v498
    %v730 = vmul.f32 %v721, %v500
    %v734 = vrot.slane %v725, 6
    %v735 = vrot.slane %v726, 6
    %v736 = vsel %vm518, %v734, %v735
    %v737 = vrot.slane %v727, 6
    %v738 = vsel %vm518, %v735, %v737
    %v741 = vadd.f32 %v724, %v736
    %v742 = vadd.f32 %v725, %v738
    %v745 = vrot.slane %v727, 4
    %v746 = vrot.slane %v728, 4
    %v747 = vsel %vm530, %v745, %v746
    %v748 = vrot.slane %v729, 4
    %v749 = vsel %vm530, %v746, %v748
    %v752 = vadd.f32 %v741, %v747
    %v753 = vadd.f32 %v742, %v749
    %v755 = vrot.slane %v729, 2
    %v756 = vrot.slane %v730, 2
    %v757 = vsel %vm48, %v755, %v756
    %v760 = vadd.f32 %v752, %v757
    %v761 = vadd.f32 %v753, %v756
    %v764 = vrot.slane %v760, 2
    %v765 = vrot.slane %v761, 2
    %v766 = vsel %vm48, %v764, %v765
    %v770 = vsel %vm48, %v547, %v764
    %v771 = vadd.f32 %v41, %v546
    %v772 = vadd.f32 %v49, %v770
    %v773 = vadd.f32 %v45, %v766
    %v774 = vadd.f32 %v45, %v765
    %v775 = vsel %vm66, %v771, 0.0
    %776 = vadd.xlane.f32.xlu0 %v775
    %v777 = vpop.xlane.xlu0 %776
    %v778 = vsel %vm66, %v772, 0.0
    %779 = vadd.xlane.f32.xlu0 %v778
    %v780 = vpop.xlane.xlu0 %779
    %v781 = vsel %vm66, %v773, 0.0
    %782 = vadd.xlane.f32.xlu0 %v781
    %v783 = vpop.xlane.xlu0 %782
    %vm784 = vcmask 257024
    %v785 = vsel %vm784, %v774, 0.0
    %786 = vadd.xlane.f32.xlu0 %v785
    %v787 = vpop.xlane.xlu0 %786
    %v788 = vrcp.pop 32.0
    %v789 = vmul.f32 %v777, %v788
    %v790 = vmul.f32 %v780, %v788
    %v791 = vmul.f32 %v783, %v788
    %v792 = vmul.f32 %v787, %v788
    %v793 = vsub.f32 %v771, %v789
    %v794 = vsub.f32 %v772, %v790
    %v795 = vsub.f32 %v773, %v791
    %v796 = vsub.f32 %v774, %v792
    %v797 = vmul.f32 %v793, %v793
    %v798 = vmul.f32 %v794, %v794
    %v799 = vmul.f32 %v795, %v795
    %v800 = vmul.f32 %v796, %v796
    %v801 = vsel %vm66, %v797, 0.0
    %802 = vadd.xlane.f32.xlu0 %v801
    %v803 = vpop.xlane.xlu0 %802
    %v804 = vsel %vm66, %v798, 0.0
    %805 = vadd.xlane.f32.xlu0 %v804
    %v806 = vpop.xlane.xlu0 %805
    %v807 = vsel %vm66, %v799, 0.0
    %808 = vadd.xlane.f32.xlu0 %v807
    %v809 = vpop.xlane.xlu0 %808
    %v810 = vsel %vm784, %v800, 0.0
    %811 = vadd.xlane.f32.xlu0 %v810
    %v812 = vpop.xlane.xlu0 %811
    %v813 = vmul.f32 %v803, %v788
    %v814 = vmul.f32 %v806, %v788
    %v815 = vmul.f32 %v809, %v788
    %v816 = vmul.f32 %v812, %v788
    %v817 = vadd.f32 %v813, 1e-05
    %v818 = vadd.f32 %v814, 1e-05
    %v819 = vadd.f32 %v815, 1e-05
    %v820 = vadd.f32 %v816, 1e-05
    %v821 = vrsqrt.pop %v817
    %v822 = vrsqrt.pop %v818
    %v823 = vrsqrt.pop %v819
    %v824 = vrsqrt.pop %v820
    %v825 = vmul.f32 %v793, %v821
    %v826 = vmul.f32 %v794, %v822
    %v827 = vmul.f32 %v795, %v823
    %v828 = vmul.f32 %v796, %v824
    %v829 = vlaneseq
    %v830 = vshrl.u32 %v829, 7
    %v831 = vsub.s32 3, %v830
    %v832 = vrot.slane %v61, %v831
    %v833 = vmul.f32 %v825, %v832
    %v834 = vmul.f32 %v826, %v832
    %v835 = vmul.f32 %v827, %v832
    %v836 = vmul.f32 %v828, %v832
    %v837 = vlaneseq
    %v838 = vshrl.u32 %v837, 7
    %v839 = vsub.s32 4, %v838
    %v840 = vrot.slane %v61, %v839
    %v841 = vadd.f32 %v833, %v840
    %v842 = vadd.f32 %v834, %v840
    %v843 = vadd.f32 %v835, %v840
    %v844 = vadd.f32 %v836, %v840
    %v845 = vld [vmem:[#allocation4 + $0x40] sm:$0xff]
    %v846 = vld [vmem:[#allocation4 + $0x48] sm:$0xff]
    %v847 = vld [vmem:[#allocation4 + $0x50] sm:$0xff]
    %v848 = vld [vmem:[#allocation4 + $0x58] sm:$0xff]
    %v849 = vlaneseq
    %v850 = vshrl.u32 %v849, 7
    %v851 = vsub.s32 1, %v850
    %v852 = vrot.slane %v61, %v851
    %v854 = vsel %vm66, %v841, 0
    %v857 = vsel %vm66, %v842, 0
    %v860 = vsel %vm66, %v843, 0
    %v863 = vsel %vm66, %v844, 0
    %865 = vmatprep.subr.mxu0 0.0
    %866 = vmatpush1.msra.mxu0 0.0
    %867 = vmatprep.subr.mxu0 0.0
    %868 = vmatpush1.msra.mxu0 0.0
    %869 = vmatprep.subr.mxu0 0.0
    %870 = vmatpush1.msra.mxu0 0.0
    %871 = vmatprep.subr.mxu0 0.0
    %872 = vmatpush1.msra.mxu0 0.0
    %873 = vmatprep.subr.mxu0 0.0
    %874 = vmatpush1.msra.mxu0 0.0
    %875 = vmatprep.subr.mxu0 0.0
    %876 = vmatpush1.msra.mxu0 0.0
    %877 = vmatprep.subr.mxu0 0.0
    %878 = vmatpush1.msra.mxu0 0.0
    %879 = vmatprep.subr.mxu0 0.0
    %880 = vmatpush1.msra.mxu0 0.0
    %881 = vmatprep.subr.mxu0 0.0
    %882 = vmatpush1.msra.mxu0 0.0
    %883 = vmatprep.subr.mxu0 0.0
    %884 = vmatpush1.msra.mxu0 0.0
    %885 = vmatprep.subr.mxu0 0.0
    %886 = vmatpush1.msra.mxu0 0.0
    %887 = vmatprep.subr.mxu0 0.0
    %888 = vmatpush1.msra.mxu0 0.0
    %889 = vmatprep.subr.mxu0 0.0
    %890 = vmatpush1.msra.mxu0 %v848
    %891 = vmatprep.subr.mxu0 0.0
    %892 = vmatpush1.msra.mxu0 %v847
    %893 = vmatprep.subr.mxu0 0.0
    %894 = vmatpush1.msra.mxu0 %v846
    %895 = vmatprep.subr.mxu0 0.0
    %896 = vmatpush1.msra.mxu0 %v845
    %897 = vmatprep.subr.mxu0 0.0
    %898 = vmatpush2.msra.mxu0 0.0
    %899 = vmatprep.subr.mxu0 0.0
    %900 = vmatpush2.msra.mxu0 0.0
    %901 = vmatprep.subr.mxu0 0.0
    %902 = vmatpush2.msra.mxu0 0.0
    %903 = vmatprep.subr.mxu0 0.0
    %904 = vmatpush2.msra.mxu0 0.0
    %905 = vmatprep.subr.mxu0 0.0
    %906 = vmatpush2.msra.mxu0 0.0
    %907 = vmatprep.subr.mxu0 0.0
    %908 = vmatpush2.msra.mxu0 0.0
    %909 = vmatprep.subr.mxu0 0.0
    %910 = vmatpush2.msra.mxu0 0.0
    %911 = vmatprep.subr.mxu0 0.0
    %912 = vmatpush2.msra.mxu0 0.0
    %913 = vmatprep.subr.mxu0 0.0
    %914 = vmatpush2.msra.mxu0 0.0
    %915 = vmatprep.subr.mxu0 0.0
    %916 = vmatpush2.msra.mxu0 0.0
    %917 = vmatprep.subr.mxu0 0.0
    %918 = vmatpush2.msra.mxu0 0.0
    %919 = vmatprep.subr.mxu0 0.0
    %920 = vmatpush2.msra.mxu0 0.0
    %921 = vmatprep.subr.mxu0 0.0
    %922 = vmatpush2.msra.mxu0 0.0
    %923 = vmatprep.subr.mxu0 0.0
    %924 = vmatpush2.msra.mxu0 0.0
    %925 = vmatprep.subr.mxu0 0.0
    %926 = vmatpush2.msra.mxu0 0.0
    %927 = vmatprep.subr.mxu0 0.0
    %928 = vmatpush2.msra.mxu0 0.0
    %929 = vmatprep.mubr.f32.mxu0 0.0
    %930 = vmatmul.mubr.f32.gmra.mxu0 %v854
    %v931 = vpop.f32.mrf.mxu0
    %v932 = vadd.f32 %v852, %v931
    %v933 = vpop.f32.mrf.mxu0
    %934 = vmatprep.mubr.f32.mxu0 0.0
    %935 = vmatmul.mubr.f32.gmra.mxu0 %v857
    %v936 = vpop.f32.mrf.mxu0
    %v937 = vadd.f32 %v852, %v936
    %v938 = vpop.f32.mrf.mxu0
    %939 = vmatprep.mubr.f32.mxu0 0.0
    %940 = vmatmul.mubr.f32.gmra.mxu0 %v860
    %v941 = vpop.f32.mrf.mxu0
    %v942 = vadd.f32 %v852, %v941
    %v943 = vpop.f32.mrf.mxu0
    %944 = vmatprep.mubr.f32.mxu0 0.0
    %945 = vmatmul.mubr.f32.gmra.mxu0 %v863
    %v946 = vpop.f32.mrf.mxu0
    %v947 = vadd.f32 %v852, %v946
    %v948 = vpop.f32.mrf.mxu0
    %949 = vdwg.mxu0
    %v950 = vmax.f32 %v932, 0.0
    %v951 = vmax.f32 %v937, 0.0
    %v952 = vmax.f32 %v942, 0.0
    %v953 = vmax.f32 %v947, 0.0
    %v954 = vlaneseq
    %v955 = vshrl.u32 %v954, 7
    %v956 = vsub.s32 2, %v955
    %v957 = vrot.slane %v61, %v956
    %962 = vrot.lane.b32.xlu0 %v845, 96
    %v963 = vpop.permute.xlu0 %962
    %964 = vrot.lane.b32.xlu0 %v846, 96
    %v965 = vpop.permute.xlu0 %964
    %966 = vrot.lane.b32.xlu0 %v847, 96
    %v967 = vpop.permute.xlu0 %966
    %968 = vrot.lane.b32.xlu0 %v848, 96
    %v969 = vpop.permute.xlu0 %968
    %v975 = vsel %vm66, %v950, 0
    %v978 = vsel %vm66, %v951, 0
    %v981 = vsel %vm66, %v952, 0
    %v984 = vsel %vm66, %v953, 0
    %986 = vmatprep.subr.mxu0 0.0
    %987 = vmatpush1.msra.mxu0 0.0
    %988 = vmatprep.subr.mxu0 0.0
    %989 = vmatpush1.msra.mxu0 0.0
    %990 = vmatprep.subr.mxu0 0.0
    %991 = vmatpush1.msra.mxu0 0.0
    %992 = vmatprep.subr.mxu0 0.0
    %993 = vmatpush1.msra.mxu0 0.0
    %994 = vmatprep.subr.mxu0 0.0
    %995 = vmatpush1.msra.mxu0 0.0
    %996 = vmatprep.subr.mxu0 0.0
    %997 = vmatpush1.msra.mxu0 0.0
    %998 = vmatprep.subr.mxu0 0.0
    %999 = vmatpush1.msra.mxu0 0.0
    %1000 = vmatprep.subr.mxu0 0.0
    %1001 = vmatpush1.msra.mxu0 0.0
    %1002 = vmatprep.subr.mxu0 0.0
    %1003 = vmatpush1.msra.mxu0 0.0
    %1004 = vmatprep.subr.mxu0 0.0
    %1005 = vmatpush1.msra.mxu0 0.0
    %1006 = vmatprep.subr.mxu0 0.0
    %1007 = vmatpush1.msra.mxu0 0.0
    %1008 = vmatprep.subr.mxu0 0.0
    %1009 = vmatpush1.msra.mxu0 0.0
    %1010 = vmatprep.subr.mxu0 0.0
    %1011 = vmatpush1.msra.mxu0 %v969
    %1012 = vmatprep.subr.mxu0 0.0
    %1013 = vmatpush1.msra.mxu0 %v967
    %1014 = vmatprep.subr.mxu0 0.0
    %1015 = vmatpush1.msra.mxu0 %v965
    %1016 = vmatprep.subr.mxu0 0.0
    %1017 = vmatpush1.msra.mxu0 %v963
    %1018 = vmatprep.subr.mxu0 0.0
    %1019 = vmatpush2.msra.mxu0 0.0
    %1020 = vmatprep.subr.mxu0 0.0
    %1021 = vmatpush2.msra.mxu0 0.0
    %1022 = vmatprep.subr.mxu0 0.0
    %1023 = vmatpush2.msra.mxu0 0.0
    %1024 = vmatprep.subr.mxu0 0.0
    %1025 = vmatpush2.msra.mxu0 0.0
    %1026 = vmatprep.subr.mxu0 0.0
    %1027 = vmatpush2.msra.mxu0 0.0
    %1028 = vmatprep.subr.mxu0 0.0
    %1029 = vmatpush2.msra.mxu0 0.0
    %1030 = vmatprep.subr.mxu0 0.0
    %1031 = vmatpush2.msra.mxu0 0.0
    %1032 = vmatprep.subr.mxu0 0.0
    %1033 = vmatpush2.msra.mxu0 0.0
    %1034 = vmatprep.subr.mxu0 0.0
    %1035 = vmatpush2.msra.mxu0 0.0
    %1036 = vmatprep.subr.mxu0 0.0
    %1037 = vmatpush2.msra.mxu0 0.0
    %1038 = vmatprep.subr.mxu0 0.0
    %1039 = vmatpush2.msra.mxu0 0.0
    %1040 = vmatprep.subr.mxu0 0.0
    %1041 = vmatpush2.msra.mxu0 0.0
    %1042 = vmatprep.subr.mxu0 0.0
    %1043 = vmatpush2.msra.mxu0 0.0
    %1044 = vmatprep.subr.mxu0 0.0
    %1045 = vmatpush2.msra.mxu0 0.0
    %1046 = vmatprep.subr.mxu0 0.0
    %1047 = vmatpush2.msra.mxu0 0.0
    %1048 = vmatprep.subr.mxu0 0.0
    %1049 = vmatpush2.msra.mxu0 0.0
    %1050 = vmatprep.mubr.f32.mxu0 0.0
    %1051 = vmatmul.mubr.f32.gmra.mxu0 %v975
    %v1052 = vpop.f32.mrf.mxu0
    %v1053 = vadd.f32 %v957, %v1052
    %v1054 = vpop.f32.mrf.mxu0
    %1055 = vmatprep.mubr.f32.mxu0 0.0
    %1056 = vmatmul.mubr.f32.gmra.mxu0 %v978
    %v1057 = vpop.f32.mrf.mxu0
    %v1058 = vadd.f32 %v957, %v1057
    %v1059 = vpop.f32.mrf.mxu0
    %1060 = vmatprep.mubr.f32.mxu0 0.0
    %1061 = vmatmul.mubr.f32.gmra.mxu0 %v981
    %v1062 = vpop.f32.mrf.mxu0
    %v1063 = vadd.f32 %v957, %v1062
    %v1064 = vpop.f32.mrf.mxu0
    %1065 = vmatprep.mubr.f32.mxu0 0.0
    %1066 = vmatmul.mubr.f32.gmra.mxu0 %v984
    %v1067 = vpop.f32.mrf.mxu0
    %v1068 = vadd.f32 %v957, %v1067
    %v1069 = vpop.f32.mrf.mxu0
    %1070 = vdwg.mxu0
    %v1071 = vadd.f32 %v841, %v1053
    %v1072 = vadd.f32 %v842, %v1058
    %v1073 = vadd.f32 %v843, %v1063
    %v1074 = vadd.f32 %v844, %v1068
    %v1075 = vsel %vm66, %v1071, 0.0
    %1076 = vadd.xlane.f32.xlu0 %v1075
    %v1077 = vpop.xlane.xlu0 %1076
    %v1078 = vsel %vm66, %v1072, 0.0
    %1079 = vadd.xlane.f32.xlu0 %v1078
    %v1080 = vpop.xlane.xlu0 %1079
    %v1081 = vsel %vm66, %v1073, 0.0
    %1082 = vadd.xlane.f32.xlu0 %v1081
    %v1083 = vpop.xlane.xlu0 %1082
    %v1084 = vsel %vm784, %v1074, 0.0
    %1085 = vadd.xlane.f32.xlu0 %v1084
    %v1086 = vpop.xlane.xlu0 %1085
    %v1087 = vmul.f32 %v1077, %v788
    %v1088 = vmul.f32 %v1080, %v788
    %v1089 = vmul.f32 %v1083, %v788
    %v1090 = vmul.f32 %v1086, %v788
    %v1091 = vsub.f32 %v1071, %v1087
    %v1092 = vsub.f32 %v1072, %v1088
    %v1093 = vsub.f32 %v1073, %v1089
    %v1094 = vsub.f32 %v1074, %v1090
    %v1095 = vmul.f32 %v1091, %v1091
    %v1096 = vmul.f32 %v1092, %v1092
    %v1097 = vmul.f32 %v1093, %v1093
    %v1098 = vmul.f32 %v1094, %v1094
    %v1099 = vsel %vm66, %v1095, 0.0
    %1100 = vadd.xlane.f32.xlu0 %v1099
    %v1101 = vpop.xlane.xlu0 %1100
    %v1102 = vsel %vm66, %v1096, 0.0
    %1103 = vadd.xlane.f32.xlu0 %v1102
    %v1104 = vpop.xlane.xlu0 %1103
    %v1105 = vsel %vm66, %v1097, 0.0
    %1106 = vadd.xlane.f32.xlu0 %v1105
    %v1107 = vpop.xlane.xlu0 %1106
    %v1108 = vsel %vm784, %v1098, 0.0
    %1109 = vadd.xlane.f32.xlu0 %v1108
    %v1110 = vpop.xlane.xlu0 %1109
    %v1111 = vmul.f32 %v1101, %v788
    %v1112 = vmul.f32 %v1104, %v788
    %v1113 = vmul.f32 %v1107, %v788
    %v1114 = vmul.f32 %v1110, %v788
    %v1115 = vadd.f32 %v1111, 1e-05
    %v1116 = vadd.f32 %v1112, 1e-05
    %v1117 = vadd.f32 %v1113, 1e-05
    %v1118 = vadd.f32 %v1114, 1e-05
    %v1119 = vrsqrt.pop %v1115
    %v1120 = vrsqrt.pop %v1116
    %v1121 = vrsqrt.pop %v1117
    %v1122 = vrsqrt.pop %v1118
    %v1123 = vmul.f32 %v1091, %v1119
    %v1124 = vmul.f32 %v1092, %v1120
    %v1125 = vmul.f32 %v1093, %v1121
    %v1126 = vmul.f32 %v1094, %v1122
    %v1127 = vlaneseq
    %v1128 = vshrl.u32 %v1127, 7
    %v1129 = vsub.s32 5, %v1128
    %v1130 = vrot.slane %v61, %v1129
    %v1131 = vmul.f32 %v1123, %v1130
    %v1132 = vmul.f32 %v1124, %v1130
    %v1133 = vmul.f32 %v1125, %v1130
    %v1134 = vmul.f32 %v1126, %v1130
    %v1135 = vlaneseq
    %v1136 = vshrl.u32 %v1135, 7
    %v1137 = vsub.s32 6, %v1136
    %v1138 = vrot.slane %v61, %v1137
    %v1139 = vadd.f32 %v1131, %v1138
    %v1140 = vadd.f32 %v1132, %v1138
    %v1141 = vadd.f32 %v1133, %v1138
    %v1142 = vadd.f32 %v1134, %v1138
    %v1143 = vld [vmem:[#allocation4 + $0x20] sm:$0xff]
    %v1144 = vld [vmem:[#allocation4 + $0x28] sm:$0xff]
    %v1145 = vld [vmem:[#allocation4 + $0x30] sm:$0xff]
    %v1146 = vld [vmem:[#allocation4 + $0x38] sm:$0xff]
    %v1147 = vld [vmem:[#allocation4 + $0xf8] sm:$0xff]
    %v1148 = vlaneseq
    %v1149 = vshrl.u32 %v1148, 7
    %v1150 = vsub.s32 0, %v1149
    %v1151 = vrot.slane %v1147, %v1150
    %v1153 = vsel %vm66, %v1139, 0
    %v1156 = vsel %vm66, %v1140, 0
    %v1159 = vsel %vm66, %v1141, 0
    %v1162 = vsel %vm66, %v1142, 0
    %1164 = vmatprep.subr.mxu0 0.0
    %1165 = vmatpush1.msra.mxu0 0.0
    %1166 = vmatprep.subr.mxu0 0.0
    %1167 = vmatpush1.msra.mxu0 0.0
    %1168 = vmatprep.subr.mxu0 0.0
    %1169 = vmatpush1.msra.mxu0 0.0
    %1170 = vmatprep.subr.mxu0 0.0
    %1171 = vmatpush1.msra.mxu0 0.0
    %1172 = vmatprep.subr.mxu0 0.0
    %1173 = vmatpush1.msra.mxu0 0.0
    %1174 = vmatprep.subr.mxu0 0.0
    %1175 = vmatpush1.msra.mxu0 0.0
    %1176 = vmatprep.subr.mxu0 0.0
    %1177 = vmatpush1.msra.mxu0 0.0
    %1178 = vmatprep.subr.mxu0 0.0
    %1179 = vmatpush1.msra.mxu0 0.0
    %1180 = vmatprep.subr.mxu0 0.0
    %1181 = vmatpush1.msra.mxu0 0.0
    %1182 = vmatprep.subr.mxu0 0.0
    %1183 = vmatpush1.msra.mxu0 0.0
    %1184 = vmatprep.subr.mxu0 0.0
    %1185 = vmatpush1.msra.mxu0 0.0
    %1186 = vmatprep.subr.mxu0 0.0
    %1187 = vmatpush1.msra.mxu0 0.0
    %1188 = vmatprep.subr.mxu0 0.0
    %1189 = vmatpush1.msra.mxu0 %v1146
    %1190 = vmatprep.subr.mxu0 0.0
    %1191 = vmatpush1.msra.mxu0 %v1145
    %1192 = vmatprep.subr.mxu0 0.0
    %1193 = vmatpush1.msra.mxu0 %v1144
    %1194 = vmatprep.subr.mxu0 0.0
    %1195 = vmatpush1.msra.mxu0 %v1143
    %1196 = vmatprep.subr.mxu0 0.0
    %1197 = vmatpush2.msra.mxu0 0.0
    %1198 = vmatprep.subr.mxu0 0.0
    %1199 = vmatpush2.msra.mxu0 0.0
    %1200 = vmatprep.subr.mxu0 0.0
    %1201 = vmatpush2.msra.mxu0 0.0
    %1202 = vmatprep.subr.mxu0 0.0
    %1203 = vmatpush2.msra.mxu0 0.0
    %1204 = vmatprep.subr.mxu0 0.0
    %1205 = vmatpush2.msra.mxu0 0.0
    %1206 = vmatprep.subr.mxu0 0.0
    %1207 = vmatpush2.msra.mxu0 0.0
    %1208 = vmatprep.subr.mxu0 0.0
    %1209 = vmatpush2.msra.mxu0 0.0
    %1210 = vmatprep.subr.mxu0 0.0
    %1211 = vmatpush2.msra.mxu0 0.0
    %1212 = vmatprep.subr.mxu0 0.0
    %1213 = vmatpush2.msra.mxu0 0.0
    %1214 = vmatprep.subr.mxu0 0.0
    %1215 = vmatpush2.msra.mxu0 0.0
    %1216 = vmatprep.subr.mxu0 0.0
    %1217 = vmatpush2.msra.mxu0 0.0
    %1218 = vmatprep.subr.mxu0 0.0
    %1219 = vmatpush2.msra.mxu0 0.0
    %1220 = vmatprep.subr.mxu0 0.0
    %1221 = vmatpush2.msra.mxu0 0.0
    %1222 = vmatprep.subr.mxu0 0.0
    %1223 = vmatpush2.msra.mxu0 0.0
    %1224 = vmatprep.subr.mxu0 0.0
    %1225 = vmatpush2.msra.mxu0 0.0
    %1226 = vmatprep.subr.mxu0 0.0
    %1227 = vmatpush2.msra.mxu0 0.0
    %1228 = vmatprep.mubr.f32.mxu0 0.0
    %1229 = vmatmul.mubr.f32.gmra.mxu0 %v1153
    %v1230 = vpop.f32.mrf.mxu0
    %v1231 = vadd.f32 %v1151, %v1230
    %v1232 = vpop.f32.mrf.mxu0
    %1233 = vmatprep.mubr.f32.mxu0 0.0
    %1234 = vmatmul.mubr.f32.gmra.mxu0 %v1156
    %v1235 = vpop.f32.mrf.mxu0
    %v1236 = vadd.f32 %v1151, %v1235
    %v1237 = vpop.f32.mrf.mxu0
    %1238 = vmatprep.mubr.f32.mxu0 0.0
    %1239 = vmatmul.mubr.f32.gmra.mxu0 %v1159
    %v1240 = vpop.f32.mrf.mxu0
    %v1241 = vadd.f32 %v1151, %v1240
    %v1242 = vpop.f32.mrf.mxu0
    %1243 = vmatprep.mubr.f32.mxu0 0.0
    %1244 = vmatmul.mubr.f32.gmra.mxu0 %v1162
    %v1245 = vpop.f32.mrf.mxu0
    %v1246 = vadd.f32 %v1151, %v1245
    %v1247 = vpop.f32.mrf.mxu0
    %1248 = vdwg.mxu0
    %v1249 = vsel %vm159, %v1231, -inf
    %1250 = vmax.xlane.f32.xlu0 %v1249
    %v1251 = vpop.xlane.xlu0 %1250
    %v1252 = vsel %vm159, %v1236, -inf
    %1253 = vmax.xlane.f32.xlu0 %v1252
    %v1254 = vpop.xlane.xlu0 %1253
    %v1255 = vsel %vm159, %v1241, -inf
    %1256 = vmax.xlane.f32.xlu0 %v1255
    %v1257 = vpop.xlane.xlu0 %1256
    %v1258 = vsel %vm169, %v1246, -inf
    %1259 = vmax.xlane.f32.xlu0 %v1258
    %v1260 = vpop.xlane.xlu0 %1259
    %v1261 = vsub.f32 %v1231, %v1251
    %v1262 = vsub.f32 %v1236, %v1254
    %v1263 = vsub.f32 %v1241, %v1257
    %v1264 = vsub.f32 %v1246, %v1260
    %v1265 = vmul.f32 %v1261, 1.442695
    %v1266 = vpow.pop %v1265
    %v1267 = vmul.f32 %v1262, 1.442695
    %v1268 = vpow.pop %v1267
    %v1269 = vmul.f32 %v1263, 1.442695
    %v1270 = vpow.pop %v1269
    %v1271 = vmul.f32 %v1264, 1.442695
    %v1272 = vpow.pop %v1271
    %1277 = vrot.lane.b32.xlu0 %v1266, 96
    %v1278 = vpop.permute.xlu0 %1277
    %1279 = vrot.lane.b32.xlu0 %v1268, 96
    %v1280 = vpop.permute.xlu0 %1279
    %1281 = vrot.lane.b32.xlu0 %v1270, 96
    %v1282 = vpop.permute.xlu0 %1281
    %1283 = vrot.lane.b32.xlu0 %v1272, 96
    %v1284 = vpop.permute.xlu0 %1283
    %v1285 = vsel %vm197, %v1278, 0
    %v1287 = vsel %vm197, %v1280, 0
    %v1289 = vsel %vm197, %v1282, 0
    %v1291 = vsel %vm197, %v1284, 0
    %1293 = vmatprep.subr.mxu0 0.0
    %1294 = vmatpush1.msra.mxu0 0.0
    %1295 = vmatprep.subr.mxu0 0.0
    %1296 = vmatpush1.msra.mxu0 0.0
    %1297 = vmatprep.subr.mxu0 0.0
    %1298 = vmatpush1.msra.mxu0 0.0
    %1299 = vmatprep.subr.mxu0 0.0
    %1300 = vmatpush1.msra.mxu0 0.0
    %1301 = vmatprep.subr.mxu0 0.0
    %1302 = vmatpush1.msra.mxu0 0.0
    %1303 = vmatprep.subr.mxu0 0.0
    %1304 = vmatpush1.msra.mxu0 0.0
    %1305 = vmatprep.subr.mxu0 0.0
    %1306 = vmatpush1.msra.mxu0 0.0
    %1307 = vmatprep.subr.mxu0 0.0
    %1308 = vmatpush1.msra.mxu0 0.0
    %1309 = vmatprep.subr.mxu0 0.0
    %1310 = vmatpush1.msra.mxu0 0.0
    %1311 = vmatprep.subr.mxu0 0.0
    %1312 = vmatpush1.msra.mxu0 %v56
    %1313 = vmatprep.subr.mxu0 0.0
    %1314 = vmatpush1.msra.mxu0 %v55
    %1315 = vmatprep.subr.mxu0 0.0
    %1316 = vmatpush1.msra.mxu0 %v54
    %1317 = vmatprep.subr.mxu0 0.0
    %1318 = vmatpush1.msra.mxu0 %v53
    %1319 = vmatprep.subr.mxu0 0.0
    %1320 = vmatpush1.msra.mxu0 %v52
    %1321 = vmatprep.subr.mxu0 0.0
    %1322 = vmatpush1.msra.mxu0 %v51
    %1323 = vmatprep.subr.mxu0 0.0
    %1324 = vmatpush1.msra.mxu0 %v50
    %1325 = vmatprep.subr.mxu0 0.0
    %1326 = vmatpush2.msra.mxu0 0.0
    %1327 = vmatprep.subr.mxu0 0.0
    %1328 = vmatpush2.msra.mxu0 0.0
    %1329 = vmatprep.subr.mxu0 0.0
    %1330 = vmatpush2.msra.mxu0 0.0
    %1331 = vmatprep.subr.mxu0 0.0
    %1332 = vmatpush2.msra.mxu0 0.0
    %1333 = vmatprep.subr.mxu0 0.0
    %1334 = vmatpush2.msra.mxu0 0.0
    %1335 = vmatprep.subr.mxu0 0.0
    %1336 = vmatpush2.msra.mxu0 0.0
    %1337 = vmatprep.subr.mxu0 0.0
    %1338 = vmatpush2.msra.mxu0 0.0
    %1339 = vmatprep.subr.mxu0 0.0
    %1340 = vmatpush2.msra.mxu0 0.0
    %1341 = vmatprep.subr.mxu0 0.0
    %1342 = vmatpush2.msra.mxu0 0.0
    %1343 = vmatprep.subr.mxu0 0.0
    %1344 = vmatpush2.msra.mxu0 0.0
    %1345 = vmatprep.subr.mxu0 0.0
    %1346 = vmatpush2.msra.mxu0 0.0
    %1347 = vmatprep.subr.mxu0 0.0
    %1348 = vmatpush2.msra.mxu0 0.0
    %1349 = vmatprep.subr.mxu0 0.0
    %1350 = vmatpush2.msra.mxu0 0.0
    %1351 = vmatprep.subr.mxu0 0.0
    %1352 = vmatpush2.msra.mxu0 0.0
    %1353 = vmatprep.subr.mxu0 0.0
    %1354 = vmatpush2.msra.mxu0 0.0
    %1355 = vmatprep.subr.mxu0 0.0
    %1356 = vmatpush2.msra.mxu0 0.0
    %1357 = vmatprep.mubr.f32.mxu0 0.0
    %1358 = vmatmul.mubr.f32.gmra.mxu0 %v1285
    %v1359 = vpop.f32.mrf.mxu0
    %v1360 = vadd.f32 0.0, %v1359
    %v1361 = vpop.f32.mrf.mxu0
    %1362 = vmatprep.mubr.f32.mxu0 0.0
    %1363 = vmatmul.mubr.f32.gmra.mxu0 %v1287
    %v1364 = vpop.f32.mrf.mxu0
    %v1365 = vadd.f32 0.0, %v1364
    %v1366 = vpop.f32.mrf.mxu0
    %1367 = vmatprep.mubr.f32.mxu0 0.0
    %1368 = vmatmul.mubr.f32.gmra.mxu0 %v1289
    %v1369 = vpop.f32.mrf.mxu0
    %v1370 = vadd.f32 0.0, %v1369
    %v1371 = vpop.f32.mrf.mxu0
    %1372 = vmatprep.mubr.f32.mxu0 0.0
    %1373 = vmatmul.mubr.f32.gmra.mxu0 %v1291
    %v1374 = vpop.f32.mrf.mxu0
    %v1375 = vadd.f32 0.0, %v1374
    %v1376 = vpop.f32.mrf.mxu0
    %1377 = vdwg.mxu0
    %1382 = vrot.lane.b32.xlu0 %v1360, 32
    %v1383 = vpop.permute.xlu0 %1382
    %1384 = vrot.lane.b32.xlu0 %v1365, 32
    %v1385 = vpop.permute.xlu0 %1384
    %1386 = vrot.lane.b32.xlu0 %v1370, 32
    %v1387 = vpop.permute.xlu0 %1386
    %1388 = vrot.lane.b32.xlu0 %v1375, 32
    %v1389 = vpop.permute.xlu0 %1388
    %v1394 = vrcp.pop %v1383
    %v1395 = vmul.f32 %v1266, %v1394
    %v1396 = vrcp.pop %v1385
    %v1397 = vmul.f32 %v1268, %v1396
    %v1398 = vrcp.pop %v1387
    %v1399 = vmul.f32 %v1270, %v1398
    %v1400 = vrcp.pop %v1389
    %v1401 = vmul.f32 %v1272, %v1400
    %1404 = vrot.lane.b32.xlu0 %v1395, 96
    %v1405 = vpop.permute.xlu0 %1404
    %1406 = vrot.lane.b32.xlu0 %v1397, 96
    %v1407 = vpop.permute.xlu0 %1406
    %1410 = vxpose.xlu0.b32.start [1/16] %v1405, 128
    %1411 = vxpose.xlu0.b32.cont [2/16] %v1407, 128
    %1412 = vxpose.xlu0.b32.cont [3/16] 0.0, 128
    %1413 = vxpose.xlu0.b32.cont [4/16] 0.0, 128
    %1414 = vxpose.xlu0.b32.cont [5/16] 0.0, 128
    %1415 = vxpose.xlu0.b32.cont [6/16] 0.0, 128
    %1416 = vxpose.xlu0.b32.cont [7/16] 0.0, 128
    %1417 = vxpose.xlu0.b32.cont [8/16] 0.0, 128
    %1418 = vxpose.xlu0.b32.cont [9/16] 0.0, 128
    %1419 = vxpose.xlu0.b32.cont [10/16] 0.0, 128
    %1420 = vxpose.xlu0.b32.cont [11/16] 0.0, 128
    %1421 = vxpose.xlu0.b32.cont [12/16] 0.0, 128
    %1422 = vxpose.xlu0.b32.cont [13/16] 0.0, 128
    %1423 = vxpose.xlu0.b32.cont [14/16] 0.0, 128
    %1424 = vxpose.xlu0.b32.cont [15/16] 0.0, 128
    %1425 = vxpose.xlu0.b32.end [16/16] 0.0, 128
    %v1426 = vpop.trf.xlu0
    %v1427 = vpop.trf.xlu0
    %v1428 = vpop.trf.xlu0
    %v1429 = vpop.trf.xlu0
    %v1430 = vpop.trf.xlu0
    %v1431 = vpop.trf.xlu0
    %v1432 = vpop.trf.xlu0
    %v1433 = vpop.trf.xlu0
    %v1434 = vpop.trf.xlu0
    %v1435 = vpop.trf.xlu0
    %v1436 = vpop.trf.xlu0
    %v1437 = vpop.trf.xlu0
    %v1438 = vpop.trf.xlu0
    %v1439 = vpop.trf.xlu0
    %v1440 = vpop.trf.xlu0
    %v1441 = vpop.trf.xlu0
    %v1443 = vsel %vm355, %v1426, 0
    %v1446 = vsel %vm355, %v1427, 0
    %v1449 = vsel %vm355, %v1428, 0
    %v1452 = vsel %vm355, %v1429, 0
    %v1455 = vsel %vm355, %v1430, 0
    %v1458 = vsel %vm355, %v1431, 0
    %v1461 = vsel %vm355, %v1432, 0
    %v1464 = vsel %vm48, %v1236, 0
    %1466 = vmatprep.subr.mxu0 0.0
    %1467 = vmatpush1.msra.mxu0 0.0
    %1468 = vmatprep.subr.mxu0 0.0
    %1469 = vmatpush1.msra.mxu0 0.0
    %1470 = vmatprep.subr.mxu0 0.0
    %1471 = vmatpush1.msra.mxu0 0.0
    %1472 = vmatprep.subr.mxu0 0.0
    %1473 = vmatpush1.msra.mxu0 0.0
    %1474 = vmatprep.subr.mxu0 0.0
    %1475 = vmatpush1.msra.mxu0 0.0
    %1476 = vmatprep.subr.mxu0 0.0
    %1477 = vmatpush1.msra.mxu0 0.0
    %1478 = vmatprep.subr.mxu0 0.0
    %1479 = vmatpush1.msra.mxu0 0.0
    %1480 = vmatprep.subr.mxu0 0.0
    %1481 = vmatpush1.msra.mxu0 0.0
    %1482 = vmatprep.subr.mxu0 0.0
    %1483 = vmatpush1.msra.mxu0 0.0
    %1484 = vmatprep.subr.mxu0 0.0
    %1485 = vmatpush1.msra.mxu0 0.0
    %1486 = vmatprep.subr.mxu0 0.0
    %1487 = vmatpush1.msra.mxu0 0.0
    %1488 = vmatprep.subr.mxu0 0.0
    %1489 = vmatpush1.msra.mxu0 0.0
    %1490 = vmatprep.subr.mxu0 0.0
    %1491 = vmatpush1.msra.mxu0 0.0
    %1492 = vmatprep.subr.mxu0 0.0
    %1493 = vmatpush1.msra.mxu0 0.0
    %1494 = vmatprep.subr.mxu0 0.0
    %1495 = vmatpush1.msra.mxu0 %v1464
    %1496 = vmatprep.subr.mxu0 0.0
    %1497 = vmatpush1.msra.mxu0 %v1231
    %1498 = vmatprep.subr.mxu0 0.0
    %1499 = vmatpush2.msra.mxu0 0.0
    %1500 = vmatprep.subr.mxu0 0.0
    %1501 = vmatpush2.msra.mxu0 0.0
    %1502 = vmatprep.subr.mxu0 0.0
    %1503 = vmatpush2.msra.mxu0 0.0
    %1504 = vmatprep.subr.mxu0 0.0
    %1505 = vmatpush2.msra.mxu0 0.0
    %1506 = vmatprep.subr.mxu0 0.0
    %1507 = vmatpush2.msra.mxu0 0.0
    %1508 = vmatprep.subr.mxu0 0.0
    %1509 = vmatpush2.msra.mxu0 0.0
    %1510 = vmatprep.subr.mxu0 0.0
    %1511 = vmatpush2.msra.mxu0 0.0
    %1512 = vmatprep.subr.mxu0 0.0
    %1513 = vmatpush2.msra.mxu0 0.0
    %1514 = vmatprep.subr.mxu0 0.0
    %1515 = vmatpush2.msra.mxu0 0.0
    %1516 = vmatprep.subr.mxu0 0.0
    %1517 = vmatpush2.msra.mxu0 0.0
    %1518 = vmatprep.subr.mxu0 0.0
    %1519 = vmatpush2.msra.mxu0 0.0
    %1520 = vmatprep.subr.mxu0 0.0
    %1521 = vmatpush2.msra.mxu0 0.0
    %1522 = vmatprep.subr.mxu0 0.0
    %1523 = vmatpush2.msra.mxu0 0.0
    %1524 = vmatprep.subr.mxu0 0.0
    %1525 = vmatpush2.msra.mxu0 0.0
    %1526 = vmatprep.subr.mxu0 0.0
    %1527 = vmatpush2.msra.mxu0 0.0
    %1528 = vmatprep.subr.mxu0 0.0
    %1529 = vmatpush2.msra.mxu0 0.0
    %1530 = vmatprep.mubr.f32.mxu0 0.0
    %1531 = vmatmul.mubr.f32.gmra.mxu0 %v1443
    %v1532 = vpop.f32.mrf.mxu0
    %v1533 = vadd.f32 0.0, %v1532
    %v1534 = vpop.f32.mrf.mxu0
    %1535 = vmatprep.mubr.f32.mxu0 0.0
    %1536 = vmatmul.mubr.f32.gmra.mxu0 %v1446
    %v1537 = vpop.f32.mrf.mxu0
    %v1538 = vadd.f32 0.0, %v1537
    %v1539 = vpop.f32.mrf.mxu0
    %1540 = vmatprep.mubr.f32.mxu0 0.0
    %1541 = vmatmul.mubr.f32.gmra.mxu0 %v1449
    %v1542 = vpop.f32.mrf.mxu0
    %v1543 = vadd.f32 0.0, %v1542
    %v1544 = vpop.f32.mrf.mxu0
    %1545 = vmatprep.mubr.f32.mxu0 0.0
    %1546 = vmatmul.mubr.f32.gmra.mxu0 %v1452
    %v1547 = vpop.f32.mrf.mxu0
    %v1548 = vadd.f32 0.0, %v1547
    %v1549 = vpop.f32.mrf.mxu0
    %1550 = vmatprep.mubr.f32.mxu0 0.0
    %1551 = vmatmul.mubr.f32.gmra.mxu0 %v1455
    %v1552 = vpop.f32.mrf.mxu0
    %v1553 = vadd.f32 0.0, %v1552
    %v1554 = vpop.f32.mrf.mxu0
    %1555 = vmatprep.mubr.f32.mxu0 0.0
    %1556 = vmatmul.mubr.f32.gmra.mxu0 %v1458
    %v1557 = vpop.f32.mrf.mxu0
    %v1558 = vadd.f32 0.0, %v1557
    %v1559 = vpop.f32.mrf.mxu0
    %1560 = vmatprep.mubr.f32.mxu0 0.0
    %1561 = vmatmul.mubr.f32.gmra.mxu0 %v1461
    %v1562 = vpop.f32.mrf.mxu0
    %v1563 = vadd.f32 0.0, %v1562
    %v1564 = vpop.f32.mrf.mxu0
    %1565 = vdwg.mxu0
    %v1566 = vmul.f32 %v1533, %v488
    %v1567 = vmul.f32 %v1538, %v490
    %v1568 = vmul.f32 %v1543, %v492
    %v1569 = vmul.f32 %v1548, %v494
    %v1570 = vmul.f32 %v1553, %v496
    %v1571 = vmul.f32 %v1558, %v498
    %v1572 = vmul.f32 %v1563, %v500
    %v1576 = vrot.slane %v1567, 6
    %v1577 = vrot.slane %v1568, 6
    %v1578 = vsel %vm518, %v1576, %v1577
    %v1579 = vrot.slane %v1569, 6
    %v1580 = vsel %vm518, %v1577, %v1579
    %v1583 = vadd.f32 %v1566, %v1578
    %v1584 = vadd.f32 %v1567, %v1580
    %v1587 = vrot.slane %v1569, 4
    %v1588 = vrot.slane %v1570, 4
    %v1589 = vsel %vm530, %v1587, %v1588
    %v1590 = vrot.slane %v1571, 4
    %v1591 = vsel %vm530, %v1588, %v1590
    %v1594 = vadd.f32 %v1583, %v1589
    %v1595 = vadd.f32 %v1584, %v1591
    %v1597 = vrot.slane %v1571, 2
    %v1598 = vrot.slane %v1572, 2
    %v1599 = vsel %vm48, %v1597, %v1598
    %v1602 = vadd.f32 %v1594, %v1599
    %v1603 = vadd.f32 %v1595, %v1598
    %v1606 = vrot.slane %v1397, 6
    %v1607 = vrot.slane %v1399, 6
    %v1608 = vsel %vm518, %v1606, %v1607
    %v1609 = vrot.slane %v1401, 6
    %v1610 = vsel %vm518, %v1607, %v1609
    %1611 = vrot.lane.b32.xlu0 %v1608, 96
    %v1612 = vpop.permute.xlu0 %1611
    %1613 = vrot.lane.b32.xlu0 %v1610, 96
    %v1614 = vpop.permute.xlu0 %1613
    %1617 = vxpose.xlu0.b32.start [1/16] %v1612, 128
    %1618 = vxpose.xlu0.b32.cont [2/16] %v1614, 128
    %1619 = vxpose.xlu0.b32.cont [3/16] 0.0, 128
    %1620 = vxpose.xlu0.b32.cont [4/16] 0.0, 128
    %1621 = vxpose.xlu0.b32.cont [5/16] 0.0, 128
    %1622 = vxpose.xlu0.b32.cont [6/16] 0.0, 128
    %1623 = vxpose.xlu0.b32.cont [7/16] 0.0, 128
    %1624 = vxpose.xlu0.b32.cont [8/16] 0.0, 128
    %1625 = vxpose.xlu0.b32.cont [9/16] 0.0, 128
    %1626 = vxpose.xlu0.b32.cont [10/16] 0.0, 128
    %1627 = vxpose.xlu0.b32.cont [11/16] 0.0, 128
    %1628 = vxpose.xlu0.b32.cont [12/16] 0.0, 128
    %1629 = vxpose.xlu0.b32.cont [13/16] 0.0, 128
    %1630 = vxpose.xlu0.b32.cont [14/16] 0.0, 128
    %1631 = vxpose.xlu0.b32.cont [15/16] 0.0, 128
    %1632 = vxpose.xlu0.b32.end [16/16] 0.0, 128
    %v1633 = vpop.trf.xlu0
    %v1634 = vpop.trf.xlu0
    %v1635 = vpop.trf.xlu0
    %v1636 = vpop.trf.xlu0
    %v1637 = vpop.trf.xlu0
    %v1638 = vpop.trf.xlu0
    %v1639 = vpop.trf.xlu0
    %v1640 = vpop.trf.xlu0
    %v1641 = vpop.trf.xlu0
    %v1642 = vpop.trf.xlu0
    %v1643 = vpop.trf.xlu0
    %v1644 = vpop.trf.xlu0
    %v1645 = vpop.trf.xlu0
    %v1646 = vpop.trf.xlu0
    %v1647 = vpop.trf.xlu0
    %v1648 = vpop.trf.xlu0
    %v1651 = vrot.slane %v1236, 6
    %v1652 = vrot.slane %v1241, 6
    %v1653 = vsel %vm518, %v1651, %v1652
    %v1654 = vrot.slane %v1246, 6
    %v1655 = vsel %vm518, %v1652, %v1654
    %v1658 = vsel %vm355, %v1633, 0
    %v1661 = vsel %vm355, %v1634, 0
    %v1664 = vsel %vm355, %v1635, 0
    %v1667 = vsel %vm355, %v1636, 0
    %v1670 = vsel %vm355, %v1637, 0
    %v1673 = vsel %vm355, %v1638, 0
    %v1676 = vsel %vm355, %v1639, 0
    %v1678 = vsel %vm48, %v1655, 0
    %1680 = vmatprep.subr.mxu0 0.0
    %1681 = vmatpush1.msra.mxu0 0.0
    %1682 = vmatprep.subr.mxu0 0.0
    %1683 = vmatpush1.msra.mxu0 0.0
    %1684 = vmatprep.subr.mxu0 0.0
    %1685 = vmatpush1.msra.mxu0 0.0
    %1686 = vmatprep.subr.mxu0 0.0
    %1687 = vmatpush1.msra.mxu0 0.0
    %1688 = vmatprep.subr.mxu0 0.0
    %1689 = vmatpush1.msra.mxu0 0.0
    %1690 = vmatprep.subr.mxu0 0.0
    %1691 = vmatpush1.msra.mxu0 0.0
    %1692 = vmatprep.subr.mxu0 0.0
    %1693 = vmatpush1.msra.mxu0 0.0
    %1694 = vmatprep.subr.mxu0 0.0
    %1695 = vmatpush1.msra.mxu0 0.0
    %1696 = vmatprep.subr.mxu0 0.0
    %1697 = vmatpush1.msra.mxu0 0.0
    %1698 = vmatprep.subr.mxu0 0.0
    %1699 = vmatpush1.msra.mxu0 0.0
    %1700 = vmatprep.subr.mxu0 0.0
    %1701 = vmatpush1.msra.mxu0 0.0
    %1702 = vmatprep.subr.mxu0 0.0
    %1703 = vmatpush1.msra.mxu0 0.0
    %1704 = vmatprep.subr.mxu0 0.0
    %1705 = vmatpush1.msra.mxu0 0.0
    %1706 = vmatprep.subr.mxu0 0.0
    %1707 = vmatpush1.msra.mxu0 0.0
    %1708 = vmatprep.subr.mxu0 0.0
    %1709 = vmatpush1.msra.mxu0 %v1678
    %1710 = vmatprep.subr.mxu0 0.0
    %1711 = vmatpush1.msra.mxu0 %v1653
    %1712 = vmatprep.subr.mxu0 0.0
    %1713 = vmatpush2.msra.mxu0 0.0
    %1714 = vmatprep.subr.mxu0 0.0
    %1715 = vmatpush2.msra.mxu0 0.0
    %1716 = vmatprep.subr.mxu0 0.0
    %1717 = vmatpush2.msra.mxu0 0.0
    %1718 = vmatprep.subr.mxu0 0.0
    %1719 = vmatpush2.msra.mxu0 0.0
    %1720 = vmatprep.subr.mxu0 0.0
    %1721 = vmatpush2.msra.mxu0 0.0
    %1722 = vmatprep.subr.mxu0 0.0
    %1723 = vmatpush2.msra.mxu0 0.0
    %1724 = vmatprep.subr.mxu0 0.0
    %1725 = vmatpush2.msra.mxu0 0.0
    %1726 = vmatprep.subr.mxu0 0.0
    %1727 = vmatpush2.msra.mxu0 0.0
    %1728 = vmatprep.subr.mxu0 0.0
    %1729 = vmatpush2.msra.mxu0 0.0
    %1730 = vmatprep.subr.mxu0 0.0
    %1731 = vmatpush2.msra.mxu0 0.0
    %1732 = vmatprep.subr.mxu0 0.0
    %1733 = vmatpush2.msra.mxu0 0.0
    %1734 = vmatprep.subr.mxu0 0.0
    %1735 = vmatpush2.msra.mxu0 0.0
    %1736 = vmatprep.subr.mxu0 0.0
    %1737 = vmatpush2.msra.mxu0 0.0
    %1738 = vmatprep.subr.mxu0 0.0
    %1739 = vmatpush2.msra.mxu0 0.0
    %1740 = vmatprep.subr.mxu0 0.0
    %1741 = vmatpush2.msra.mxu0 0.0
    %1742 = vmatprep.subr.mxu0 0.0
    %1743 = vmatpush2.msra.mxu0 0.0
    %1744 = vmatprep.mubr.f32.mxu0 0.0
    %1745 = vmatmul.mubr.f32.gmra.mxu0 %v1658
    %v1746 = vpop.f32.mrf.mxu0
    %v1747 = vadd.f32 0.0, %v1746
    %v1748 = vpop.f32.mrf.mxu0
    %1749 = vmatprep.mubr.f32.mxu0 0.0
    %1750 = vmatmul.mubr.f32.gmra.mxu0 %v1661
    %v1751 = vpop.f32.mrf.mxu0
    %v1752 = vadd.f32 0.0, %v1751
    %v1753 = vpop.f32.mrf.mxu0
    %1754 = vmatprep.mubr.f32.mxu0 0.0
    %1755 = vmatmul.mubr.f32.gmra.mxu0 %v1664
    %v1756 = vpop.f32.mrf.mxu0
    %v1757 = vadd.f32 0.0, %v1756
    %v1758 = vpop.f32.mrf.mxu0
    %1759 = vmatprep.mubr.f32.mxu0 0.0
    %1760 = vmatmul.mubr.f32.gmra.mxu0 %v1667
    %v1761 = vpop.f32.mrf.mxu0
    %v1762 = vadd.f32 0.0, %v1761
    %v1763 = vpop.f32.mrf.mxu0
    %1764 = vmatprep.mubr.f32.mxu0 0.0
    %1765 = vmatmul.mubr.f32.gmra.mxu0 %v1670
    %v1766 = vpop.f32.mrf.mxu0
    %v1767 = vadd.f32 0.0, %v1766
    %v1768 = vpop.f32.mrf.mxu0
    %1769 = vmatprep.mubr.f32.mxu0 0.0
    %1770 = vmatmul.mubr.f32.gmra.mxu0 %v1673
    %v1771 = vpop.f32.mrf.mxu0
    %v1772 = vadd.f32 0.0, %v1771
    %v1773 = vpop.f32.mrf.mxu0
    %1774 = vmatprep.mubr.f32.mxu0 0.0
    %1775 = vmatmul.mubr.f32.gmra.mxu0 %v1676
    %v1776 = vpop.f32.mrf.mxu0
    %v1777 = vadd.f32 0.0, %v1776
    %v1778 = vpop.f32.mrf.mxu0
    %1779 = vdwg.mxu0
    %v1780 = vmul.f32 %v1747, %v488
    %v1781 = vmul.f32 %v1752, %v490
    %v1782 = vmul.f32 %v1757, %v492
    %v1783 = vmul.f32 %v1762, %v494
    %v1784 = vmul.f32 %v1767, %v496
    %v1785 = vmul.f32 %v1772, %v498
    %v1786 = vmul.f32 %v1777, %v500
    %v1790 = vrot.slane %v1781, 6
    %v1791 = vrot.slane %v1782, 6
    %v1792 = vsel %vm518, %v1790, %v1791
    %v1793 = vrot.slane %v1783, 6
    %v1794 = vsel %vm518, %v1791, %v1793
    %v1797 = vadd.f32 %v1780, %v1792
    %v1798 = vadd.f32 %v1781, %v1794
    %v1801 = vrot.slane %v1783, 4
    %v1802 = vrot.slane %v1784, 4
    %v1803 = vsel %vm530, %v1801, %v1802
    %v1804 = vrot.slane %v1785, 4
    %v1805 = vsel %vm530, %v1802, %v1804
    %v1808 = vadd.f32 %v1797, %v1803
    %v1809 = vadd.f32 %v1798, %v1805
    %v1811 = vrot.slane %v1785, 2
    %v1812 = vrot.slane %v1786, 2
    %v1813 = vsel %vm48, %v1811, %v1812
    %v1816 = vadd.f32 %v1808, %v1813
    %v1817 = vadd.f32 %v1809, %v1812
    %v1820 = vrot.slane %v1816, 2
    %v1821 = vrot.slane %v1817, 2
    %v1822 = vsel %vm48, %v1820, %v1821
    %v1826 = vsel %vm48, %v1603, %v1820
    %v1827 = vadd.f32 %v1139, %v1602
    %v1828 = vadd.f32 %v1140, %v1826
    %v1829 = vadd.f32 %v1141, %v1822
    %v1830 = vadd.f32 %v1142, %v1821
    %v1831 = vsel %vm66, %v1827, 0.0
    %1832 = vadd.xlane.f32.xlu0 %v1831
    %v1833 = vpop.xlane.xlu0 %1832
    %v1834 = vsel %vm66, %v1828, 0.0
    %1835 = vadd.xlane.f32.xlu0 %v1834
    %v1836 = vpop.xlane.xlu0 %1835
    %v1837 = vsel %vm66, %v1829, 0.0
    %1838 = vadd.xlane.f32.xlu0 %v1837
    %v1839 = vpop.xlane.xlu0 %1838
    %v1840 = vsel %vm784, %v1830, 0.0
    %1841 = vadd.xlane.f32.xlu0 %v1840
    %v1842 = vpop.xlane.xlu0 %1841
    %v1843 = vmul.f32 %v1833, %v788
    %v1844 = vmul.f32 %v1836, %v788
    %v1845 = vmul.f32 %v1839, %v788
    %v1846 = vmul.f32 %v1842, %v788
    %v1847 = vsub.f32 %v1827, %v1843
    %v1848 = vsub.f32 %v1828, %v1844
    %v1849 = vsub.f32 %v1829, %v1845
    %v1850 = vsub.f32 %v1830, %v1846
    %v1851 = vmul.f32 %v1847, %v1847
    %v1852 = vmul.f32 %v1848, %v1848
    %v1853 = vmul.f32 %v1849, %v1849
    %v1854 = vmul.f32 %v1850, %v1850
    %v1855 = vsel %vm66, %v1851, 0.0
    %1856 = vadd.xlane.f32.xlu0 %v1855
    %v1857 = vpop.xlane.xlu0 %1856
    %v1858 = vsel %vm66, %v1852, 0.0
    %1859 = vadd.xlane.f32.xlu0 %v1858
    %v1860 = vpop.xlane.xlu0 %1859
    %v1861 = vsel %vm66, %v1853, 0.0
    %1862 = vadd.xlane.f32.xlu0 %v1861
    %v1863 = vpop.xlane.xlu0 %1862
    %v1864 = vsel %vm784, %v1854, 0.0
    %1865 = vadd.xlane.f32.xlu0 %v1864
    %v1866 = vpop.xlane.xlu0 %1865
    %v1867 = vmul.f32 %v1857, %v788
    %v1868 = vmul.f32 %v1860, %v788
    %v1869 = vmul.f32 %v1863, %v788
    %v1870 = vmul.f32 %v1866, %v788
    %v1871 = vadd.f32 %v1867, 1e-05
    %v1872 = vadd.f32 %v1868, 1e-05
    %v1873 = vadd.f32 %v1869, 1e-05
    %v1874 = vadd.f32 %v1870, 1e-05
    %v1875 = vrsqrt.pop %v1871
    %v1876 = vrsqrt.pop %v1872
    %v1877 = vrsqrt.pop %v1873
    %v1878 = vrsqrt.pop %v1874
    %v1879 = vmul.f32 %v1847, %v1875
    %v1880 = vmul.f32 %v1848, %v1876
    %v1881 = vmul.f32 %v1849, %v1877
    %v1882 = vmul.f32 %v1850, %v1878
    %v1883 = vlaneseq
    %v1884 = vshrl.u32 %v1883, 7
    %v1885 = vsub.s32 3, %v1884
    %v1886 = vrot.slane %v1147, %v1885
    %v1887 = vmul.f32 %v1879, %v1886
    %v1888 = vmul.f32 %v1880, %v1886
    %v1889 = vmul.f32 %v1881, %v1886
    %v1890 = vmul.f32 %v1882, %v1886
    %v1891 = vlaneseq
    %v1892 = vshrl.u32 %v1891, 7
    %v1893 = vsub.s32 4, %v1892
    %v1894 = vrot.slane %v1147, %v1893
    %v1895 = vadd.f32 %v1887, %v1894
    %v1896 = vadd.f32 %v1888, %v1894
    %v1897 = vadd.f32 %v1889, %v1894
    %v1898 = vadd.f32 %v1890, %v1894
    %v1899 = vld [vmem:[#allocation4 + $0x60] sm:$0xff]
    %v1900 = vld [vmem:[#allocation4 + $0x68] sm:$0xff]
    %v1901 = vld [vmem:[#allocation4 + $0x70] sm:$0xff]
    %v1902 = vld [vmem:[#allocation4 + $0x78] sm:$0xff]
    %v1903 = vlaneseq
    %v1904 = vshrl.u32 %v1903, 7
    %v1905 = vsub.s32 1, %v1904
    %v1906 = vrot.slane %v1147, %v1905
    %v1908 = vsel %vm66, %v1895, 0
    %v1911 = vsel %vm66, %v1896, 0
    %v1914 = vsel %vm66, %v1897, 0
    %v1917 = vsel %vm66, %v1898, 0
    %1919 = vmatprep.subr.mxu0 0.0
    %1920 = vmatpush1.msra.mxu0 0.0
    %1921 = vmatprep.subr.mxu0 0.0
    %1922 = vmatpush1.msra.mxu0 0.0
    %1923 = vmatprep.subr.mxu0 0.0
    %1924 = vmatpush1.msra.mxu0 0.0
    %1925 = vmatprep.subr.mxu0 0.0
    %1926 = vmatpush1.msra.mxu0 0.0
    %1927 = vmatprep.subr.mxu0 0.0
    %1928 = vmatpush1.msra.mxu0 0.0
    %1929 = vmatprep.subr.mxu0 0.0
    %1930 = vmatpush1.msra.mxu0 0.0
    %1931 = vmatprep.subr.mxu0 0.0
    %1932 = vmatpush1.msra.mxu0 0.0
    %1933 = vmatprep.subr.mxu0 0.0
    %1934 = vmatpush1.msra.mxu0 0.0
    %1935 = vmatprep.subr.mxu0 0.0
    %1936 = vmatpush1.msra.mxu0 0.0
    %1937 = vmatprep.subr.mxu0 0.0
    %1938 = vmatpush1.msra.mxu0 0.0
    %1939 = vmatprep.subr.mxu0 0.0
    %1940 = vmatpush1.msra.mxu0 0.0
    %1941 = vmatprep.subr.mxu0 0.0
    %1942 = vmatpush1.msra.mxu0 0.0
    %1943 = vmatprep.subr.mxu0 0.0
    %1944 = vmatpush1.msra.mxu0 %v1902
    %1945 = vmatprep.subr.mxu0 0.0
    %1946 = vmatpush1.msra.mxu0 %v1901
    %1947 = vmatprep.subr.mxu0 0.0
    %1948 = vmatpush1.msra.mxu0 %v1900
    %1949 = vmatprep.subr.mxu0 0.0
    %1950 = vmatpush1.msra.mxu0 %v1899
    %1951 = vmatprep.subr.mxu0 0.0
    %1952 = vmatpush2.msra.mxu0 0.0
    %1953 = vmatprep.subr.mxu0 0.0
    %1954 = vmatpush2.msra.mxu0 0.0
    %1955 = vmatprep.subr.mxu0 0.0
    %1956 = vmatpush2.msra.mxu0 0.0
    %1957 = vmatprep.subr.mxu0 0.0
    %1958 = vmatpush2.msra.mxu0 0.0
    %1959 = vmatprep.subr.mxu0 0.0
    %1960 = vmatpush2.msra.mxu0 0.0
    %1961 = vmatprep.subr.mxu0 0.0
    %1962 = vmatpush2.msra.mxu0 0.0
    %1963 = vmatprep.subr.mxu0 0.0
    %1964 = vmatpush2.msra.mxu0 0.0
    %1965 = vmatprep.subr.mxu0 0.0
    %1966 = vmatpush2.msra.mxu0 0.0
    %1967 = vmatprep.subr.mxu0 0.0
    %1968 = vmatpush2.msra.mxu0 0.0
    %1969 = vmatprep.subr.mxu0 0.0
    %1970 = vmatpush2.msra.mxu0 0.0
    %1971 = vmatprep.subr.mxu0 0.0
    %1972 = vmatpush2.msra.mxu0 0.0
    %1973 = vmatprep.subr.mxu0 0.0
    %1974 = vmatpush2.msra.mxu0 0.0
    %1975 = vmatprep.subr.mxu0 0.0
    %1976 = vmatpush2.msra.mxu0 0.0
    %1977 = vmatprep.subr.mxu0 0.0
    %1978 = vmatpush2.msra.mxu0 0.0
    %1979 = vmatprep.subr.mxu0 0.0
    %1980 = vmatpush2.msra.mxu0 0.0
    %1981 = vmatprep.subr.mxu0 0.0
    %1982 = vmatpush2.msra.mxu0 0.0
    %1983 = vmatprep.mubr.f32.mxu0 0.0
    %1984 = vmatmul.mubr.f32.gmra.mxu0 %v1908
    %v1985 = vpop.f32.mrf.mxu0
    %v1986 = vadd.f32 %v1906, %v1985
    %v1987 = vpop.f32.mrf.mxu0
    %1988 = vmatprep.mubr.f32.mxu0 0.0
    %1989 = vmatmul.mubr.f32.gmra.mxu0 %v1911
    %v1990 = vpop.f32.mrf.mxu0
    %v1991 = vadd.f32 %v1906, %v1990
    %v1992 = vpop.f32.mrf.mxu0
    %1993 = vmatprep.mubr.f32.mxu0 0.0
    %1994 = vmatmul.mubr.f32.gmra.mxu0 %v1914
    %v1995 = vpop.f32.mrf.mxu0
    %v1996 = vadd.f32 %v1906, %v1995
    %v1997 = vpop.f32.mrf.mxu0
    %1998 = vmatprep.mubr.f32.mxu0 0.0
    %1999 = vmatmul.mubr.f32.gmra.mxu0 %v1917
    %v2000 = vpop.f32.mrf.mxu0
    %v2001 = vadd.f32 %v1906, %v2000
    %v2002 = vpop.f32.mrf.mxu0
    %2003 = vdwg.mxu0
    %v2004 = vmax.f32 %v1986, 0.0
    %v2005 = vmax.f32 %v1991, 0.0
    %v2006 = vmax.f32 %v1996, 0.0
    %v2007 = vmax.f32 %v2001, 0.0
    %v2008 = vlaneseq
    %v2009 = vshrl.u32 %v2008, 7
    %v2010 = vsub.s32 2, %v2009
    %v2011 = vrot.slane %v1147, %v2010
    %2016 = vrot.lane.b32.xlu0 %v1899, 96
    %v2017 = vpop.permute.xlu0 %2016
    %2018 = vrot.lane.b32.xlu0 %v1900, 96
    %v2019 = vpop.permute.xlu0 %2018
    %2020 = vrot.lane.b32.xlu0 %v1901, 96
    %v2021 = vpop.permute.xlu0 %2020
    %2022 = vrot.lane.b32.xlu0 %v1902, 96
    %v2023 = vpop.permute.xlu0 %2022
    %v2029 = vsel %vm66, %v2004, 0
    %v2032 = vsel %vm66, %v2005, 0
    %v2035 = vsel %vm66, %v2006, 0
    %v2038 = vsel %vm66, %v2007, 0
    %2040 = vmatprep.subr.mxu0 0.0
    %2041 = vmatpush1.msra.mxu0 0.0
    %2042 = vmatprep.subr.mxu0 0.0
    %2043 = vmatpush1.msra.mxu0 0.0
    %2044 = vmatprep.subr.mxu0 0.0
    %2045 = vmatpush1.msra.mxu0 0.0
    %2046 = vmatprep.subr.mxu0 0.0
    %2047 = vmatpush1.msra.mxu0 0.0
    %2048 = vmatprep.subr.mxu0 0.0
    %2049 = vmatpush1.msra.mxu0 0.0
    %2050 = vmatprep.subr.mxu0 0.0
    %2051 = vmatpush1.msra.mxu0 0.0
    %2052 = vmatprep.subr.mxu0 0.0
    %2053 = vmatpush1.msra.mxu0 0.0
    %2054 = vmatprep.subr.mxu0 0.0
    %2055 = vmatpush1.msra.mxu0 0.0
    %2056 = vmatprep.subr.mxu0 0.0
    %2057 = vmatpush1.msra.mxu0 0.0
    %2058 = vmatprep.subr.mxu0 0.0
    %2059 = vmatpush1.msra.mxu0 0.0
    %2060 = vmatprep.subr.mxu0 0.0
    %2061 = vmatpush1.msra.mxu0 0.0
    %2062 = vmatprep.subr.mxu0 0.0
    %2063 = vmatpush1.msra.mxu0 0.0
    %2064 = vmatprep.subr.mxu0 0.0
    %2065 = vmatpush1.msra.mxu0 %v2023
    %2066 = vmatprep.subr.mxu0 0.0
    %2067 = vmatpush1.msra.mxu0 %v2021
    %2068 = vmatprep.subr.mxu0 0.0
    %2069 = vmatpush1.msra.mxu0 %v2019
    %2070 = vmatprep.subr.mxu0 0.0
    %2071 = vmatpush1.msra.mxu0 %v2017
    %2072 = vmatprep.subr.mxu0 0.0
    %2073 = vmatpush2.msra.mxu0 0.0
    %2074 = vmatprep.subr.mxu0 0.0
    %2075 = vmatpush2.msra.mxu0 0.0
    %2076 = vmatprep.subr.mxu0 0.0
    %2077 = vmatpush2.msra.mxu0 0.0
    %2078 = vmatprep.subr.mxu0 0.0
    %2079 = vmatpush2.msra.mxu0 0.0
    %2080 = vmatprep.subr.mxu0 0.0
    %2081 = vmatpush2.msra.mxu0 0.0
    %2082 = vmatprep.subr.mxu0 0.0
    %2083 = vmatpush2.msra.mxu0 0.0
    %2084 = vmatprep.subr.mxu0 0.0
    %2085 = vmatpush2.msra.mxu0 0.0
    %2086 = vmatprep.subr.mxu0 0.0
    %2087 = vmatpush2.msra.mxu0 0.0
    %2088 = vmatprep.subr.mxu0 0.0
    %2089 = vmatpush2.msra.mxu0 0.0
    %2090 = vmatprep.subr.mxu0 0.0
    %2091 = vmatpush2.msra.mxu0 0.0
    %2092 = vmatprep.subr.mxu0 0.0
    %2093 = vmatpush2.msra.mxu0 0.0
    %2094 = vmatprep.subr.mxu0 0.0
    %2095 = vmatpush2.msra.mxu0 0.0
    %2096 = vmatprep.subr.mxu0 0.0
    %2097 = vmatpush2.msra.mxu0 0.0
    %2098 = vmatprep.subr.mxu0 0.0
    %2099 = vmatpush2.msra.mxu0 0.0
    %2100 = vmatprep.subr.mxu0 0.0
    %2101 = vmatpush2.msra.mxu0 0.0
    %2102 = vmatprep.subr.mxu0 0.0
    %2103 = vmatpush2.msra.mxu0 0.0
    %2104 = vmatprep.mubr.f32.mxu0 0.0
    %2105 = vmatmul.mubr.f32.gmra.mxu0 %v2029
    %v2106 = vpop.f32.mrf.mxu0
    %v2107 = vadd.f32 %v2011, %v2106
    %v2108 = vpop.f32.mrf.mxu0
    %2109 = vmatprep.mubr.f32.mxu0 0.0
    %2110 = vmatmul.mubr.f32.gmra.mxu0 %v2032
    %v2111 = vpop.f32.mrf.mxu0
    %v2112 = vadd.f32 %v2011, %v2111
    %v2113 = vpop.f32.mrf.mxu0
    %2114 = vmatprep.mubr.f32.mxu0 0.0
    %2115 = vmatmul.mubr.f32.gmra.mxu0 %v2035
    %v2116 = vpop.f32.mrf.mxu0
    %v2117 = vadd.f32 %v2011, %v2116
    %v2118 = vpop.f32.mrf.mxu0
    %2119 = vmatprep.mubr.f32.mxu0 0.0
    %2120 = vmatmul.mubr.f32.gmra.mxu0 %v2038
    %v2121 = vpop.f32.mrf.mxu0
    %v2122 = vadd.f32 %v2011, %v2121
    %v2123 = vpop.f32.mrf.mxu0
    %2124 = vdwg.mxu0
    %v2125 = vadd.f32 %v1895, %v2107
    %v2126 = vadd.f32 %v1896, %v2112
    %v2127 = vadd.f32 %v1897, %v2117
    %v2128 = vadd.f32 %v1898, %v2122
    %v2129 = vsel %vm66, %v2125, 0.0
    %2130 = vadd.xlane.f32.xlu0 %v2129
    %v2131 = vpop.xlane.xlu0 %2130
    %v2132 = vsel %vm66, %v2126, 0.0
    %2133 = vadd.xlane.f32.xlu0 %v2132
    %v2134 = vpop.xlane.xlu0 %2133
    %v2135 = vsel %vm66, %v2127, 0.0
    %2136 = vadd.xlane.f32.xlu0 %v2135
    %v2137 = vpop.xlane.xlu0 %2136
    %v2138 = vsel %vm784, %v2128, 0.0
    %2139 = vadd.xlane.f32.xlu0 %v2138
    %v2140 = vpop.xlane.xlu0 %2139
    %v2141 = vmul.f32 %v2131, %v788
    %v2142 = vmul.f32 %v2134, %v788
    %v2143 = vmul.f32 %v2137, %v788
    %v2144 = vmul.f32 %v2140, %v788
    %v2145 = vsub.f32 %v2125, %v2141
    %v2146 = vsub.f32 %v2126, %v2142
    %v2147 = vsub.f32 %v2127, %v2143
    %v2148 = vsub.f32 %v2128, %v2144
    %v2149 = vmul.f32 %v2145, %v2145
    %v2150 = vmul.f32 %v2146, %v2146
    %v2151 = vmul.f32 %v2147, %v2147
    %v2152 = vmul.f32 %v2148, %v2148
    %v2153 = vsel %vm66, %v2149, 0.0
    %2154 = vadd.xlane.f32.xlu0 %v2153
    %v2155 = vpop.xlane.xlu0 %2154
    %v2156 = vsel %vm66, %v2150, 0.0
    %2157 = vadd.xlane.f32.xlu0 %v2156
    %v2158 = vpop.xlane.xlu0 %2157
    %v2159 = vsel %vm66, %v2151, 0.0
    %2160 = vadd.xlane.f32.xlu0 %v2159
    %v2161 = vpop.xlane.xlu0 %2160
    %v2162 = vsel %vm784, %v2152, 0.0
    %2163 = vadd.xlane.f32.xlu0 %v2162
    %v2164 = vpop.xlane.xlu0 %2163
    %v2165 = vmul.f32 %v2155, %v788
    %v2166 = vmul.f32 %v2158, %v788
    %v2167 = vmul.f32 %v2161, %v788
    %v2168 = vmul.f32 %v2164, %v788
    %v2169 = vadd.f32 %v2165, 1e-05
    %v2170 = vadd.f32 %v2166, 1e-05
    %v2171 = vadd.f32 %v2167, 1e-05
    %v2172 = vadd.f32 %v2168, 1e-05
    %v2173 = vrsqrt.pop %v2169
    %v2174 = vrsqrt.pop %v2170
    %v2175 = vrsqrt.pop %v2171
    %v2176 = vrsqrt.pop %v2172
    %v2177 = vmul.f32 %v2145, %v2173
    %v2178 = vmul.f32 %v2146, %v2174
    %v2179 = vmul.f32 %v2147, %v2175
    %v2180 = vmul.f32 %v2148, %v2176
    %v2181 = vlaneseq
    %v2182 = vshrl.u32 %v2181, 7
    %v2183 = vsub.s32 5, %v2182
    %v2184 = vrot.slane %v1147, %v2183
    %v2185 = vmul.f32 %v2177, %v2184
    %v2186 = vmul.f32 %v2178, %v2184
    %v2187 = vmul.f32 %v2179, %v2184
    %v2188 = vmul.f32 %v2180, %v2184
    %v2189 = vlaneseq
    %v2190 = vshrl.u32 %v2189, 7
    %v2191 = vsub.s32 6, %v2190
    %v2192 = vrot.slane %v1147, %v2191
    %v2193 = vadd.f32 %v2185, %v2192
    %v2194 = vadd.f32 %v2186, %v2192
    %v2195 = vadd.f32 %v2187, %v2192
    %v2196 = vadd.f32 %v2188, %v2192
    %v2197 = vld [vmem:[#allocation4 + $0xc0] sm:$0xff]
    %v2198 = vld [vmem:[#allocation4 + $0xc8] sm:$0xff]
    %v2199 = vld [vmem:[#allocation4 + $0xd0] sm:$0xff]
    %v2200 = vld [vmem:[#allocation4 + $0xd8] sm:$0xff]
    %v2201 = vld [vmem:[#allocation4 + $0xe0] sm:$0xff]
    %v2202 = vld [vmem:[#allocation4 + $0xe8] sm:$0x3f]
    %v2203 = vld [vmem:[#allocation4 + $0x100] sm:$0x1]
    %v2205 = vsel %vm66, %v2193, 0
    %v2208 = vsel %vm66, %v2194, 0
    %v2211 = vsel %vm66, %v2195, 0
    %v2214 = vsel %vm66, %v2196, 0
    %2216 = vmatprep.subr.mxu0 0.0
    %2217 = vmatpush1.msra.mxu0 0.0
    %2218 = vmatprep.subr.mxu0 0.0
    %2219 = vmatpush1.msra.mxu0 0.0
    %2220 = vmatprep.subr.mxu0 0.0
    %2221 = vmatpush1.msra.mxu0 0.0
    %2222 = vmatprep.subr.mxu0 0.0
    %2223 = vmatpush1.msra.mxu0 0.0
    %2224 = vmatprep.subr.mxu0 0.0
    %2225 = vmatpush1.msra.mxu0 0.0
    %2226 = vmatprep.subr.mxu0 0.0
    %2227 = vmatpush1.msra.mxu0 0.0
    %2228 = vmatprep.subr.mxu0 0.0
    %2229 = vmatpush1.msra.mxu0 0.0
    %2230 = vmatprep.subr.mxu0 0.0
    %2231 = vmatpush1.msra.mxu0 0.0
    %2232 = vmatprep.subr.mxu0 0.0
    %2233 = vmatpush1.msra.mxu0 0.0
    %2234 = vmatprep.subr.mxu0 0.0
    %2235 = vmatpush1.msra.mxu0 0.0
    %2236 = vmatprep.subr.mxu0 0.0
    %2237 = vmatpush1.msra.mxu0 0.0
    %2238 = vmatprep.subr.mxu0 0.0
    %2239 = vmatpush1.msra.mxu0 0.0
    %2240 = vmatprep.subr.mxu0 0.0
    %2241 = vmatpush1.msra.mxu0 %v2200
    %2242 = vmatprep.subr.mxu0 0.0
    %2243 = vmatpush1.msra.mxu0 %v2199
    %2244 = vmatprep.subr.mxu0 0.0
    %2245 = vmatpush1.msra.mxu0 %v2198
    %2246 = vmatprep.subr.mxu0 0.0
    %2247 = vmatpush1.msra.mxu0 %v2197
    %2248 = vmatprep.subr.mxu0 0.0
    %2249 = vmatpush2.msra.mxu0 0.0
    %2250 = vmatprep.subr.mxu0 0.0
    %2251 = vmatpush2.msra.mxu0 0.0
    %2252 = vmatprep.subr.mxu0 0.0
    %2253 = vmatpush2.msra.mxu0 0.0
    %2254 = vmatprep.subr.mxu0 0.0
    %2255 = vmatpush2.msra.mxu0 0.0
    %2256 = vmatprep.subr.mxu0 0.0
    %2257 = vmatpush2.msra.mxu0 0.0
    %2258 = vmatprep.subr.mxu0 0.0
    %2259 = vmatpush2.msra.mxu0 0.0
    %2260 = vmatprep.subr.mxu0 0.0
    %2261 = vmatpush2.msra.mxu0 0.0
    %2262 = vmatprep.subr.mxu0 0.0
    %2263 = vmatpush2.msra.mxu0 0.0
    %2264 = vmatprep.subr.mxu0 0.0
    %2265 = vmatpush2.msra.mxu0 0.0
    %2266 = vmatprep.subr.mxu0 0.0
    %2267 = vmatpush2.msra.mxu0 0.0
    %2268 = vmatprep.subr.mxu0 0.0
    %2269 = vmatpush2.msra.mxu0 0.0
    %2270 = vmatprep.subr.mxu0 0.0
    %2271 = vmatpush2.msra.mxu0 0.0
    %2272 = vmatprep.subr.mxu0 0.0
    %2273 = vmatpush2.msra.mxu0 0.0
    %2274 = vmatprep.subr.mxu0 0.0
    %2275 = vmatpush2.msra.mxu0 0.0
    %2276 = vmatprep.subr.mxu0 0.0
    %2277 = vmatpush2.msra.mxu0 0.0
    %2278 = vmatprep.subr.mxu0 0.0
    %2279 = vmatpush2.msra.mxu0 0.0
    %2280 = vmatprep.mubr.f32.mxu0 0.0
    %2281 = vmatmul.mubr.f32.gmra.mxu0 %v2205
    %v2282 = vpop.f32.mrf.mxu0
    %v2283 = vadd.f32 0.0, %v2282
    %v2284 = vpop.f32.mrf.mxu0
    %2285 = vmatprep.mubr.f32.mxu0 0.0
    %2286 = vmatmul.mubr.f32.gmra.mxu0 %v2208
    %v2287 = vpop.f32.mrf.mxu0
    %v2288 = vadd.f32 0.0, %v2287
    %v2289 = vpop.f32.mrf.mxu0
    %2290 = vmatprep.mubr.f32.mxu0 0.0
    %2291 = vmatmul.mubr.f32.gmra.mxu0 %v2211
    %v2292 = vpop.f32.mrf.mxu0
    %v2293 = vadd.f32 0.0, %v2292
    %v2294 = vpop.f32.mrf.mxu0
    %2295 = vmatprep.mubr.f32.mxu0 0.0
    %2296 = vmatmul.mubr.f32.gmra.mxu0 %v2214
    %v2297 = vpop.f32.mrf.mxu0
    %v2298 = vadd.f32 0.0, %v2297
    %v2299 = vpop.f32.mrf.mxu0
    %2300 = vdwg.mxu0
    %v2301 = vmul.f32 %v2283, %v2201
    %v2302 = vmul.f32 %v2288, %v2202
    %vm2303 = vcmask 343040
    %v2304 = vsel %vm2303, %v2301, 0.0
    %vm2305 = vcmask 340992
    %v2306 = vsel %vm2305, %v2302, 0.0
    %v2307 = vadd.f32 %v2304, %v2306
    %v2308 = vrot.slane %v2307, 4
    %v2309 = vadd.f32 %v2307, %v2308
    %v2310 = vrot.slane %v2309, 2
    %v2311 = vadd.f32 %v2309, %v2310
    %v2312 = vrot.slane %v2311, 1
    %v2313 = vadd.f32 %v2311, %v2312
    %v2316 = vrot.slane %v2201, 2
    %v2317 = vrot.slane %v2202, 2
    %v2318 = vsel %vm48, %v2316, %v2317
    %v2322 = vmul.f32 %v2288, %v2316
    %v2323 = vmul.f32 %v2293, %v2318
    %v2324 = vmul.f32 %v2298, %v2317
    %v2328 = vrot.slane %v2322, 6
    %v2329 = vrot.slane %v2323, 6
    %v2330 = vsel %vm518, %v2328, %v2329
    %v2331 = vrot.slane %v2324, 6
    %v2332 = vsel %vm518, %v2329, %v2331
    %v2335 = vsel %vm2303, %v2330, 0.0
    %v2336 = vsel %vm2305, %v2332, 0.0
    %v2337 = vadd.f32 %v2335, %v2336
    %v2338 = vrot.slane %v2337, 4
    %v2339 = vadd.f32 %v2337, %v2338
    %v2340 = vrot.slane %v2339, 2
    %v2341 = vadd.f32 %v2339, %v2340
    %v2342 = vrot.slane %v2341, 1
    %v2343 = vadd.f32 %v2341, %v2342
    %vm2344 = vcmask 1040384
    %v2345 = vsel %vm2344, %v2313, %v2343
    %v2346 = vlaneseq
    %v2347 = vshrl.u32 %v2346, 7
    %v2348 = vsub.s32 0, %v2347
    %v2349 = vrot.slane %v2203, %v2348
    %v2350 = vadd.f32 %v2345, %v2349
    %vm2351 = vcmask 336896
    %2352 = vst.msk [vmem:[%s2] sm:$0x3] %vm2351, %v2350
    // Predicated region
    $region18: #{mhcac_forward.1} parent=1 // pred_check
      _
    $region19: #{mhcac_forward.1} parent=1 // pred_check_branch
      %2354 = sbr.rel (0) target = $region21
    $region20: #{mhcac_forward.1} parent=1 // pred_region
      _
    $region21: #{mhcac_forward.1} parent=1 // pred_fallthru
      _
    // Predicated region
    $region22: #{mhcac_forward.1} parent=1 // pred_check
      _
    $region23: #{mhcac_forward.1} parent=1 // pred_check_branch
      %2356 = sbr.rel (0) target = $region25
    $region24: #{mhcac_forward.1} parent=1 // pred_region
      _
    $region25: #{mhcac_forward.1} parent=1 // pred_fallthru
      _
    %2357 = vsyncpa [#allocation3], 1
    %2358 = vsyncpa [#allocation5], 1

</llo_original>
